<compile_context>
chip_gen: v6e
topology: v6e:2x2x1
jax: 0.10.0
libtpu: 0.0.40
codegen_flags: <defaults>
</compile_context>

<pallas_src>
import functools
import math

import jax
import jax.numpy as jnp
from jax.experimental import pallas as pl
from jax.experimental.pallas import tpu as pltpu

_LN_EPS = 1e-5
_NT = (((1,), (1,)), ((), ()))   # A @ B.T  (contract last dim of both)
_NN = (((1,), (0,)), ((), ()))   # A @ B


def _round_up(x, m):
    return ((x + m - 1) // m) * m


def _vmem_limit_bytes():
    # ~85% of physical VMEM (~110 MiB v5e/v6e, ~54 MiB v7x); safe fallback.
    try:
        return int(pltpu.get_tpu_info().vmem_capacity_bytes * 0.85)
    except Exception:
        return 64 * 1024 * 1024


# ----------------------------------------------------------------------------
# Kernel 1: single-head GATConv over the (padded) GO graph — batch independent
# ----------------------------------------------------------------------------
def gat_kernel(goe_ref, gatw_ref, al_ref, ar_ref, gatb_ref, bias_ref, g_ref):
    f32, bf16 = jnp.float32, jnp.bfloat16

    z = jax.lax.dot_general(goe_ref[...], gatw_ref[...], _NT,
                            preferred_element_type=f32)            # (Np, D)
    # source score directly as a lane-major row (no XLU transpose): (1, Np)
    el_row = jax.lax.dot_general(al_ref[...], z, _NT,
                                 preferred_element_type=f32)
    # destination score as an MXU NT dot instead of VPU mul + XLU reduce: (Np, 1)
    er_col = jax.lax.dot_general(z, ar_ref[...], _NT,
                                 preferred_element_type=f32)

    e = er_col + el_row                           # e[dst, src]
    e = jnp.maximum(e, 0.2 * e)                   # leaky_relu, slope 0.2
    e = e + bias_ref[...].astype(f32)             # additive mask (0 / -1e30)
    e = e - jnp.max(e, axis=-1, keepdims=True)    # self-loops => finite row max
    p = jnp.exp(e)                                # masked entries underflow to 0
    denom = jnp.sum(p, axis=-1, keepdims=True)
    alpha = p * pl.reciprocal(denom, approx=True)           # EUP, VALU stays free

    g = jax.lax.dot_general(alpha.astype(bf16), z.astype(bf16), _NN,
                            preferred_element_type=f32)
    g_ref[...] = (g + gatb_ref[...]).astype(g_ref.dtype)            # (Np, D) bf16


# ----------------------------------------------------------------------------
# Kernel 2: MLP stack + sigmoid head — gridded over batch tiles ("parallel")
# ----------------------------------------------------------------------------
def mlp_head_kernel(feat_ref,
                    w1_ref, b1_ref, g1_ref, beta1_ref,
                    w2_ref, b2_ref, g2_ref, beta2_ref,
                    g_ref, gob_ref, out_ref):
    f32, bf16 = jnp.float32, jnp.bfloat16

    # --- MLPBlock 1: LayerNorm(ReLU(x @ W1.T + b1)) ---
    x = feat_ref[...]                              # already bf16
    h = jax.lax.dot_general(x, w1_ref[...], _NT, preferred_element_type=f32)
    h = jnp.maximum(h + b1_ref[...], 0.0)
    mean = jnp.mean(h, axis=-1, keepdims=True)
    var = jnp.mean((h - mean) ** 2, axis=-1, keepdims=True)
    h = g1_ref[...] * (h - mean) * jax.lax.rsqrt(var + _LN_EPS) + beta1_ref[...]

    # --- Residual(MLPBlock 2): h + LayerNorm(ReLU(h @ W2.T + b2)) ---
    h2 = jax.lax.dot_general(h.astype(bf16), w2_ref[...], _NT,
                             preferred_element_type=f32)
    h2 = jnp.maximum(h2 + b2_ref[...], 0.0)
    m2 = jnp.mean(h2, axis=-1, keepdims=True)
    v2 = jnp.mean((h2 - m2) ** 2, axis=-1, keepdims=True)
    h = h + (g2_ref[...] * (h2 - m2) * jax.lax.rsqrt(v2 + _LN_EPS)
             + beta2_ref[...])

    # --- head: sigmoid(h @ g.T + go_bias) ---
    logits = jax.lax.dot_general(h.astype(bf16), g_ref[...], _NT,
                                 preferred_element_type=f32)
    out_ref[...] = jax.nn.sigmoid(logits + gob_ref[...])


# ----------------------------------------------------------------------------
# Parameter init / graph construction (matches the PyTorch module's init)
# ----------------------------------------------------------------------------
def init_params(key, nb_iprs, nb_gos, hidden_dim, embed_dim):
    ks = jax.random.split(key, 12)
    k_embed = math.sqrt(1.0 / embed_dim)

    def lin_init(k, fan_in, shape):
        bound = math.sqrt(1.0 / fan_in)
        return jax.random.uniform(k, shape, jnp.float32, -bound, bound)

    return {
        "w1": lin_init(ks[0], nb_iprs, (hidden_dim, nb_iprs)),
        "b1": lin_init(ks[1], nb_iprs, (hidden_dim,)),
        "g1": jnp.ones((hidden_dim,), jnp.float32),
        "beta1": jnp.zeros((hidden_dim,), jnp.float32),
        "w2": lin_init(ks[2], hidden_dim, (hidden_dim, hidden_dim)),
        "b2": lin_init(ks[3], hidden_dim, (hidden_dim,)),
        "g2": jnp.ones((hidden_dim,), jnp.float32),
        "beta2": jnp.zeros((hidden_dim,), jnp.float32),
        "go_embed": jax.random.uniform(ks[4], (nb_gos, embed_dim), jnp.float32,
                                       -k_embed, k_embed),
        "go_bias": jax.random.uniform(ks[5], (nb_gos, 1), jnp.float32,
                                      -k_embed, k_embed),
        "gat_w": lin_init(ks[6], embed_dim, (embed_dim, embed_dim)),
        "gat_attn_l": lin_init(ks[7], embed_dim, (embed_dim,)),
        "gat_attn_r": lin_init(ks[8], embed_dim, (embed_dim,)),
        "gat_bias": jnp.zeros((embed_dim,), jnp.float32),
    }


def make_go_graph(key, nb_gos, edge_prob=0.2):
    """Dense adjacency adj[dst, src] = 1.0 iff edge src->dst (self-loops included)."""
    adj = (jax.random.uniform(key, (nb_gos, nb_gos)) < edge_prob).astype(jnp.float32)
    adj = jnp.maximum(adj, jnp.eye(nb_gos, dtype=jnp.float32))
    return adj


# ----------------------------------------------------------------------------
# One-time packing: bf16 MXU weights, (1,D) rows, GO dim padded to 128 multiple,
# adjacency converted to an additive bf16 attention bias.
# ----------------------------------------------------------------------------
def pack_inputs(params, adj):
    f32, bf16 = jnp.float32, jnp.bfloat16
    nb_gos, _ = params["go_embed"].shape
    n_pad = _round_up(nb_gos, 128)
    pad = n_pad - nb_gos

    row = lambda v: v.reshape(1, -1).astype(f32)

    go_embed = jnp.pad(params["go_embed"].astype(bf16), ((0, pad), (0, 0)))
    go_bias = jnp.pad(params["go_bias"].reshape(1, -1).astype(f32),
                      ((0, 0), (0, pad)))
    adj_p = jnp.pad(adj.astype(f32), ((0, pad), (0, pad)))
    # self-loops on padded nodes keep their softmax rows finite; their outputs
    # are sliced away and pad columns stay masked off for real rows.
    adj_p = jnp.maximum(adj_p, jnp.eye(n_pad, dtype=f32))
    # Invariant the kernel relies on: every row has at least one valid edge.
    assert bool(jnp.all(jnp.diag(adj_p) > 0)), "padded adjacency lost self-loops"
    # Additive attention bias: 0.0 on edges, -1e30 off edges (bf16 halves DMA).
    attn_bias = jnp.where(adj_p > 0, 0.0, -1e30).astype(bf16)

    packed = {
        "w1": params["w1"].astype(bf16), "b1": row(params["b1"]),
        "g1": row(params["g1"]), "beta1": row(params["beta1"]),
        "w2": params["w2"].astype(bf16), "b2": row(params["b2"]),
        "g2": row(params["g2"]), "beta2": row(params["beta2"]),
        "go_embed": go_embed,
        "gat_w": params["gat_w"].astype(bf16),
        "attn_l": row(params["gat_attn_l"]), "attn_r": row(params["gat_attn_r"]),
        "gat_bias": row(params["gat_bias"]),
        "attn_bias": attn_bias, "go_bias": go_bias,
    }
    return packed, nb_gos


# ----------------------------------------------------------------------------
# Forward: GAT kernel once + batched MLP/head kernel gridded over batch tiles
# ----------------------------------------------------------------------------
@functools.partial(jax.jit, static_argnums=(2, 3))
def dggat_forward(packed, features, nb_gos, batch_tile):
    assert batch_tile % 8 == 0, "batch tile must be a multiple of 8 (sublane)"
    B = features.shape[0]
    n_pad, embed = packed["go_embed"].shape
    hidden, nb_iprs = packed["w1"].shape
    vmem_limit = _vmem_limit_bytes()

    # --- Kernel 1: batch-independent GAT branch, computed exactly once ---
    g = pl.pallas_call(
        gat_kernel,
        out_shape=jax.ShapeDtypeStruct((n_pad, embed), jnp.bfloat16),
        in_specs=[pl.BlockSpec(memory_space=pltpu.MemorySpace.VMEM)] * 6,
        out_specs=pl.BlockSpec(memory_space=pltpu.MemorySpace.VMEM),
        compiler_params=pltpu.CompilerParams(vmem_limit_bytes=vmem_limit),
    )(
        packed["go_embed"], packed["gat_w"], packed["attn_l"],
        packed["attn_r"], packed["gat_bias"], packed["attn_bias"],
    )

    # --- Kernel 2: MLP + head, grid over batch tiles ("parallel" for megacore) ---
    b_pad = _round_up(B, batch_tile)
    feats = jnp.pad(features.astype(jnp.bfloat16), ((0, b_pad - B), (0, 0)))

    full = lambda shape: pl.BlockSpec(shape, lambda i: (0, 0))  # resident weights
    out_pad = pl.pallas_call(
        mlp_head_kernel,
        out_shape=jax.ShapeDtypeStruct((b_pad, n_pad), jnp.float32),
        grid=(b_pad // batch_tile,),
        in_specs=[
            pl.BlockSpec((batch_tile, nb_iprs), lambda i: (i, 0)),   # features
            full((hidden, nb_iprs)), full((1, hidden)), full((1, hidden)),
            full((1, hidden)),
            full((hidden, hidden)), full((1, hidden)), full((1, hidden)),
            full((1, hidden)),
            full((n_pad, embed)),                                    # g (bf16)
            full((1, n_pad)),                                        # go_bias
        ],
        out_specs=pl.BlockSpec((batch_tile, n_pad), lambda i: (i, 0)),
        compiler_params=pltpu.CompilerParams(
            dimension_semantics=("parallel",),
            vmem_limit_bytes=vmem_limit),
    )(
        feats,
        packed["w1"], packed["b1"], packed["g1"], packed["beta1"],
        packed["w2"], packed["b2"], packed["g2"], packed["beta2"],
        g, packed["go_bias"],
    )
    return out_pad[:B, :nb_gos]


# ----------------------------------------------------------------------------
# main
# ----------------------------------------------------------------------------
if __name__ == "__main__":
    # Small demo shapes (production: batch tile 128 on v5e, 256 on v6e/v7x).
    B = 8
    NB_IPRS = 128     # input interpro-feature length
    HIDDEN = 128      # hidden_dim
    EMBED = 128       # embed_dim
    NB_GOS = 64       # number of GO terms (padded to 128 internally)
    BATCH_TILE = 8

    key = jax.random.PRNGKey(0)
    k_params, k_graph, k_feat = jax.random.split(key, 3)

    params = init_params(k_params, NB_IPRS, NB_GOS, HIDDEN, EMBED)
    adj = make_go_graph(k_graph, NB_GOS)
    features = jax.random.uniform(k_feat, (B, NB_IPRS), jnp.float32)

    packed, nb_gos = pack_inputs(params, adj)

    logits = dggat_forward(packed, features, nb_gos, BATCH_TILE)
    logits = jax.block_until_ready(logits)

    assert logits.shape == (B, NB_GOS)
    assert bool(jnp.all(jnp.isfinite(logits)))
    assert bool(jnp.all((logits >= 0.0) & (logits <= 1.0)))
    print("KERNEL_OK")
</pallas_src>

<mosaic_0001>
module attributes {stable_mosaic.version = 11 : i64} {
  func.func @mlp_head_kernel(%arg0: i32, %arg1: memref<8x128xbf16, #tpu.memory_space<vmem>>, %arg2: memref<128x128xbf16, #tpu.memory_space<vmem>>, %arg3: memref<1x128xf32, #tpu.memory_space<vmem>>, %arg4: memref<1x128xf32, #tpu.memory_space<vmem>>, %arg5: memref<1x128xf32, #tpu.memory_space<vmem>>, %arg6: memref<128x128xbf16, #tpu.memory_space<vmem>>, %arg7: memref<1x128xf32, #tpu.memory_space<vmem>>, %arg8: memref<1x128xf32, #tpu.memory_space<vmem>>, %arg9: memref<1x128xf32, #tpu.memory_space<vmem>>, %arg10: memref<128x128xbf16, #tpu.memory_space<vmem>>, %arg11: memref<1x128xf32, #tpu.memory_space<vmem>>, %arg12: memref<8x128xf32, #tpu.memory_space<vmem>>) attributes {dimension_semantics = [#tpu.dimension_semantics<parallel>], iteration_bounds = array<i64: 1>, scalar_prefetch = 0 : i64, scratch_operands = 0 : i64, tpu.core_type = #tpu.core_type<tc>, window_params = [{transform_indices = @transform_0, window_bounds = array<i64: 8, 128>}, {pipeline_mode = #tpu.pipeline_mode<synchronous>, transform_indices = @transform_1, window_bounds = array<i64: 128, 128>}, {pipeline_mode = #tpu.pipeline_mode<synchronous>, transform_indices = @transform_2, window_bounds = array<i64: 1, 128>}, {pipeline_mode = #tpu.pipeline_mode<synchronous>, transform_indices = @transform_3, window_bounds = array<i64: 1, 128>}, {pipeline_mode = #tpu.pipeline_mode<synchronous>, transform_indices = @transform_4, window_bounds = array<i64: 1, 128>}, {pipeline_mode = #tpu.pipeline_mode<synchronous>, transform_indices = @transform_5, window_bounds = array<i64: 128, 128>}, {pipeline_mode = #tpu.pipeline_mode<synchronous>, transform_indices = @transform_6, window_bounds = array<i64: 1, 128>}, {pipeline_mode = #tpu.pipeline_mode<synchronous>, transform_indices = @transform_7, window_bounds = array<i64: 1, 128>}, {pipeline_mode = #tpu.pipeline_mode<synchronous>, transform_indices = @transform_8, window_bounds = array<i64: 1, 128>}, {pipeline_mode = #tpu.pipeline_mode<synchronous>, transform_indices = @transform_9, window_bounds = array<i64: 128, 128>}, {pipeline_mode = #tpu.pipeline_mode<synchronous>, transform_indices = @transform_10, window_bounds = array<i64: 1, 128>}, {transform_indices = @transform_11, window_bounds = array<i64: 8, 128>}]} {
    %c0 = arith.constant 0 : index
    %c0_0 = arith.constant 0 : index
    %0 = vector.load %arg1[%c0, %c0_0] : memref<8x128xbf16, #tpu.memory_space<vmem>>, vector<8x128xbf16>
    %c0_1 = arith.constant 0 : index
    %c0_2 = arith.constant 0 : index
    %1 = vector.load %arg2[%c0_1, %c0_2] : memref<128x128xbf16, #tpu.memory_space<vmem>>, vector<128x128xbf16>
    %cst = arith.constant dense<0.000000e+00> : vector<8x128xf32>
    %2 = tpu.matmul %0, %1, %cst {dimension_numbers = #tpu.dot_dimension_numbers<[1], [1], [0], [0], [0, 0, 1, 0], [], []>} : vector<8x128xbf16>, vector<128x128xbf16>, vector<8x128xf32> -> vector<8x128xf32>
    %c0_3 = arith.constant 0 : index
    %c0_4 = arith.constant 0 : index
    %3 = vector.load %arg3[%c0_3, %c0_4] : memref<1x128xf32, #tpu.memory_space<vmem>>, vector<1x128xf32>
    %4 = vector.broadcast %3 : vector<1x128xf32> to vector<8x128xf32>
    %5 = arith.addf %2, %4 : vector<8x128xf32>
    %cst_5 = arith.constant 0.000000e+00 : f32
    %6 = vector.broadcast %cst_5 : f32 to vector<8x128xf32>
    %7 = arith.maximumf %5, %6 : vector<8x128xf32>
    %cst_6 = arith.constant dense<0.000000e+00> : vector<8xf32>
    %8 = vector.multi_reduction <add>, %7, %cst_6 [1] : vector<8x128xf32> to vector<8xf32>
    %9 = vector.shape_cast %8 : vector<8xf32> to vector<8x1xf32>
    %cst_7 = arith.constant 1.280000e+02 : f32
    %10 = vector.broadcast %cst_7 : f32 to vector<8x1xf32>
    %11 = arith.divf %9, %10 : vector<8x1xf32>
    %12 = vector.broadcast %11 : vector<8x1xf32> to vector<8x128xf32>
    %13 = arith.subf %7, %12 : vector<8x128xf32>
    %14 = arith.mulf %13, %13 : vector<8x128xf32>
    %cst_8 = arith.constant dense<0.000000e+00> : vector<8xf32>
    %15 = vector.multi_reduction <add>, %14, %cst_8 [1] : vector<8x128xf32> to vector<8xf32>
    %16 = vector.shape_cast %15 : vector<8xf32> to vector<8x1xf32>
    %cst_9 = arith.constant 1.280000e+02 : f32
    %17 = vector.broadcast %cst_9 : f32 to vector<8x1xf32>
    %18 = arith.divf %16, %17 : vector<8x1xf32>
    %c0_10 = arith.constant 0 : index
    %c0_11 = arith.constant 0 : index
    %19 = vector.load %arg4[%c0_10, %c0_11] : memref<1x128xf32, #tpu.memory_space<vmem>>, vector<1x128xf32>
    %20 = vector.broadcast %11 : vector<8x1xf32> to vector<8x128xf32>
    %21 = arith.subf %7, %20 : vector<8x128xf32>
    %22 = vector.broadcast %19 : vector<1x128xf32> to vector<8x128xf32>
    %23 = arith.mulf %22, %21 : vector<8x128xf32>
    %cst_12 = arith.constant 9.99999974E-6 : f32
    %24 = vector.broadcast %cst_12 : f32 to vector<8x1xf32>
    %25 = arith.addf %18, %24 : vector<8x1xf32>
    %26 = math.rsqrt %25 : vector<8x1xf32>
    %27 = vector.broadcast %26 : vector<8x1xf32> to vector<8x128xf32>
    %28 = arith.mulf %23, %27 : vector<8x128xf32>
    %c0_13 = arith.constant 0 : index
    %c0_14 = arith.constant 0 : index
    %29 = vector.load %arg5[%c0_13, %c0_14] : memref<1x128xf32, #tpu.memory_space<vmem>>, vector<1x128xf32>
    %30 = vector.broadcast %29 : vector<1x128xf32> to vector<8x128xf32>
    %31 = arith.addf %28, %30 : vector<8x128xf32>
    %32 = arith.truncf %31 : vector<8x128xf32> to vector<8x128xbf16>
    %c0_15 = arith.constant 0 : index
    %c0_16 = arith.constant 0 : index
    %33 = vector.load %arg6[%c0_15, %c0_16] : memref<128x128xbf16, #tpu.memory_space<vmem>>, vector<128x128xbf16>
    %cst_17 = arith.constant dense<0.000000e+00> : vector<8x128xf32>
    %34 = tpu.matmul %32, %33, %cst_17 {dimension_numbers = #tpu.dot_dimension_numbers<[1], [1], [0], [0], [0, 0, 1, 0], [], []>} : vector<8x128xbf16>, vector<128x128xbf16>, vector<8x128xf32> -> vector<8x128xf32>
    %c0_18 = arith.constant 0 : index
    %c0_19 = arith.constant 0 : index
    %35 = vector.load %arg7[%c0_18, %c0_19] : memref<1x128xf32, #tpu.memory_space<vmem>>, vector<1x128xf32>
    %36 = vector.broadcast %35 : vector<1x128xf32> to vector<8x128xf32>
    %37 = arith.addf %34, %36 : vector<8x128xf32>
    %cst_20 = arith.constant 0.000000e+00 : f32
    %38 = vector.broadcast %cst_20 : f32 to vector<8x128xf32>
    %39 = arith.maximumf %37, %38 : vector<8x128xf32>
    %cst_21 = arith.constant dense<0.000000e+00> : vector<8xf32>
    %40 = vector.multi_reduction <add>, %39, %cst_21 [1] : vector<8x128xf32> to vector<8xf32>
    %41 = vector.shape_cast %40 : vector<8xf32> to vector<8x1xf32>
    %cst_22 = arith.constant 1.280000e+02 : f32
    %42 = vector.broadcast %cst_22 : f32 to vector<8x1xf32>
    %43 = arith.divf %41, %42 : vector<8x1xf32>
    %44 = vector.broadcast %43 : vector<8x1xf32> to vector<8x128xf32>
    %45 = arith.subf %39, %44 : vector<8x128xf32>
    %46 = arith.mulf %45, %45 : vector<8x128xf32>
    %cst_23 = arith.constant dense<0.000000e+00> : vector<8xf32>
    %47 = vector.multi_reduction <add>, %46, %cst_23 [1] : vector<8x128xf32> to vector<8xf32>
    %48 = vector.shape_cast %47 : vector<8xf32> to vector<8x1xf32>
    %cst_24 = arith.constant 1.280000e+02 : f32
    %49 = vector.broadcast %cst_24 : f32 to vector<8x1xf32>
    %50 = arith.divf %48, %49 : vector<8x1xf32>
    %c0_25 = arith.constant 0 : index
    %c0_26 = arith.constant 0 : index
    %51 = vector.load %arg8[%c0_25, %c0_26] : memref<1x128xf32, #tpu.memory_space<vmem>>, vector<1x128xf32>
    %52 = vector.broadcast %43 : vector<8x1xf32> to vector<8x128xf32>
    %53 = arith.subf %39, %52 : vector<8x128xf32>
    %54 = vector.broadcast %51 : vector<1x128xf32> to vector<8x128xf32>
    %55 = arith.mulf %54, %53 : vector<8x128xf32>
    %cst_27 = arith.constant 9.99999974E-6 : f32
    %56 = vector.broadcast %cst_27 : f32 to vector<8x1xf32>
    %57 = arith.addf %50, %56 : vector<8x1xf32>
    %58 = math.rsqrt %57 : vector<8x1xf32>
    %59 = vector.broadcast %58 : vector<8x1xf32> to vector<8x128xf32>
    %60 = arith.mulf %55, %59 : vector<8x128xf32>
    %c0_28 = arith.constant 0 : index
    %c0_29 = arith.constant 0 : index
    %61 = vector.load %arg9[%c0_28, %c0_29] : memref<1x128xf32, #tpu.memory_space<vmem>>, vector<1x128xf32>
    %62 = vector.broadcast %61 : vector<1x128xf32> to vector<8x128xf32>
    %63 = arith.addf %60, %62 : vector<8x128xf32>
    %64 = arith.addf %31, %63 : vector<8x128xf32>
    %65 = arith.truncf %64 : vector<8x128xf32> to vector<8x128xbf16>
    %c0_30 = arith.constant 0 : index
    %c0_31 = arith.constant 0 : index
    %66 = vector.load %arg10[%c0_30, %c0_31] : memref<128x128xbf16, #tpu.memory_space<vmem>>, vector<128x128xbf16>
    %cst_32 = arith.constant dense<0.000000e+00> : vector<8x128xf32>
    %67 = tpu.matmul %65, %66, %cst_32 {dimension_numbers = #tpu.dot_dimension_numbers<[1], [1], [0], [0], [0, 0, 1, 0], [], []>} : vector<8x128xbf16>, vector<128x128xbf16>, vector<8x128xf32> -> vector<8x128xf32>
    %c0_33 = arith.constant 0 : index
    %c0_34 = arith.constant 0 : index
    %68 = vector.load %arg11[%c0_33, %c0_34] : memref<1x128xf32, #tpu.memory_space<vmem>>, vector<1x128xf32>
    %69 = vector.broadcast %68 : vector<1x128xf32> to vector<8x128xf32>
    %70 = arith.addf %67, %69 : vector<8x128xf32>
    %71 = arith.negf %70 : vector<8x128xf32>
    %72 = math.exp %71 : vector<8x128xf32>
    %cst_35 = arith.constant 1.000000e+00 : f32
    %73 = vector.broadcast %cst_35 : f32 to vector<8x128xf32>
    %74 = arith.addf %73, %72 : vector<8x128xf32>
    %75 = arith.divf %73, %74 : vector<8x128xf32>
    %c0_36 = arith.constant 0 : index
    %c0_37 = arith.constant 0 : index
    %76 = vector.load %arg12[%c0_36, %c0_37] : memref<8x128xf32, #tpu.memory_space<vmem>>, vector<8x128xf32>
    tpu.vector_store %arg12[%c0_36, %c0_37], %75 {strides = array<i32>} : memref<8x128xf32, #tpu.memory_space<vmem>>, vector<8x128xf32>,
    return
  }
  func.func @transform_0(%arg0: i32) -> (i32, i32) {
    %c0_i32 = arith.constant 0 : i32
    %c0_i32_0 = arith.constant 0 : i32
    return %arg0, %c0_i32 : i32, i32
  }
  func.func @transform_1(%arg0: i32) -> (i32, i32) {
    %c0_i32 = arith.constant 0 : i32
    %c0_i32_0 = arith.constant 0 : i32
    %c0_i32_1 = arith.constant 0 : i32
    return %c0_i32, %c0_i32_0 : i32, i32
  }
  func.func @transform_2(%arg0: i32) -> (i32, i32) {
    %c0_i32 = arith.constant 0 : i32
    %c0_i32_0 = arith.constant 0 : i32
    %c0_i32_1 = arith.constant 0 : i32
    return %c0_i32, %c0_i32_0 : i32, i32
  }
  func.func @transform_3(%arg0: i32) -> (i32, i32) {
    %c0_i32 = arith.constant 0 : i32
    %c0_i32_0 = arith.constant 0 : i32
    %c0_i32_1 = arith.constant 0 : i32
    return %c0_i32, %c0_i32_0 : i32, i32
  }
  func.func @transform_4(%arg0: i32) -> (i32, i32) {
    %c0_i32 = arith.constant 0 : i32
    %c0_i32_0 = arith.constant 0 : i32
    %c0_i32_1 = arith.constant 0 : i32
    return %c0_i32, %c0_i32_0 : i32, i32
  }
  func.func @transform_5(%arg0: i32) -> (i32, i32) {
    %c0_i32 = arith.constant 0 : i32
    %c0_i32_0 = arith.constant 0 : i32
    %c0_i32_1 = arith.constant 0 : i32
    return %c0_i32, %c0_i32_0 : i32, i32
  }
  func.func @transform_6(%arg0: i32) -> (i32, i32) {
    %c0_i32 = arith.constant 0 : i32
    %c0_i32_0 = arith.constant 0 : i32
    %c0_i32_1 = arith.constant 0 : i32
    return %c0_i32, %c0_i32_0 : i32, i32
  }
  func.func @transform_7(%arg0: i32) -> (i32, i32) {
    %c0_i32 = arith.constant 0 : i32
    %c0_i32_0 = arith.constant 0 : i32
    %c0_i32_1 = arith.constant 0 : i32
    return %c0_i32, %c0_i32_0 : i32, i32
  }
  func.func @transform_8(%arg0: i32) -> (i32, i32) {
    %c0_i32 = arith.constant 0 : i32
    %c0_i32_0 = arith.constant 0 : i32
    %c0_i32_1 = arith.constant 0 : i32
    return %c0_i32, %c0_i32_0 : i32, i32
  }
  func.func @transform_9(%arg0: i32) -> (i32, i32) {
    %c0_i32 = arith.constant 0 : i32
    %c0_i32_0 = arith.constant 0 : i32
    %c0_i32_1 = arith.constant 0 : i32
    return %c0_i32, %c0_i32_0 : i32, i32
  }
  func.func @transform_10(%arg0: i32) -> (i32, i32) {
    %c0_i32 = arith.constant 0 : i32
    %c0_i32_0 = arith.constant 0 : i32
    %c0_i32_1 = arith.constant 0 : i32
    return %c0_i32, %c0_i32_0 : i32, i32
  }
  func.func @transform_11(%arg0: i32) -> (i32, i32) {
    %c0_i32 = arith.constant 0 : i32
    %c0_i32_0 = arith.constant 0 : i32
    return %arg0, %c0_i32 : i32, i32
  }
}

module attributes {stable_mosaic.version = 11 : i64} {
  func.func @gat_kernel(%arg0: memref<128x128xbf16, #tpu.memory_space<vmem>>, %arg1: memref<128x128xbf16, #tpu.memory_space<vmem>>, %arg2: memref<1x128xf32, #tpu.memory_space<vmem>>, %arg3: memref<1x128xf32, #tpu.memory_space<vmem>>, %arg4: memref<1x128xf32, #tpu.memory_space<vmem>>, %arg5: memref<128x128xbf16, #tpu.memory_space<vmem>>, %arg6: memref<128x128xbf16, #tpu.memory_space<vmem>>) attributes {dimension_semantics = [], scalar_prefetch = 0 : i64, scratch_operands = 0 : i64, tpu.core_type = #tpu.core_type<tc>} {
    %c0 = arith.constant 0 : index
    %c0_0 = arith.constant 0 : index
    %0 = vector.load %arg0[%c0, %c0_0] : memref<128x128xbf16, #tpu.memory_space<vmem>>, vector<128x128xbf16>
    %c0_1 = arith.constant 0 : index
    %c0_2 = arith.constant 0 : index
    %1 = vector.load %arg1[%c0_1, %c0_2] : memref<128x128xbf16, #tpu.memory_space<vmem>>, vector<128x128xbf16>
    %cst = arith.constant dense<0.000000e+00> : vector<128x128xf32>
    %2 = tpu.matmul %0, %1, %cst {dimension_numbers = #tpu.dot_dimension_numbers<[1], [1], [0], [0], [0, 0, 1, 0], [], []>} : vector<128x128xbf16>, vector<128x128xbf16>, vector<128x128xf32> -> vector<128x128xf32>
    %c0_3 = arith.constant 0 : index
    %c0_4 = arith.constant 0 : index
    %3 = vector.load %arg2[%c0_3, %c0_4] : memref<1x128xf32, #tpu.memory_space<vmem>>, vector<1x128xf32>
    %cst_5 = arith.constant dense<0.000000e+00> : vector<1x128xf32>
    %4 = tpu.matmul %3, %2, %cst_5 {dimension_numbers = #tpu.dot_dimension_numbers<[1], [1], [0], [0], [0, 0, 1, 0], [], []>} : vector<1x128xf32>, vector<128x128xf32>, vector<1x128xf32> -> vector<1x128xf32>
    %c0_6 = arith.constant 0 : index
    %c0_7 = arith.constant 0 : index
    %5 = vector.load %arg3[%c0_6, %c0_7] : memref<1x128xf32, #tpu.memory_space<vmem>>, vector<1x128xf32>
    %cst_8 = arith.constant dense<0.000000e+00> : vector<128x1xf32>
    %6 = tpu.matmul %2, %5, %cst_8 {dimension_numbers = #tpu.dot_dimension_numbers<[1], [1], [0], [0], [0, 0, 1, 0], [], []>} : vector<128x128xf32>, vector<1x128xf32>, vector<128x1xf32> -> vector<128x1xf32>
    %7 = vector.broadcast %6 : vector<128x1xf32> to vector<128x128xf32>
    %8 = vector.broadcast %4 : vector<1x128xf32> to vector<128x128xf32>
    %9 = arith.addf %7, %8 : vector<128x128xf32>
    %cst_9 = arith.constant 2.000000e-01 : f32
    %10 = vector.broadcast %cst_9 : f32 to vector<128x128xf32>
    %11 = arith.mulf %10, %9 : vector<128x128xf32>
    %12 = arith.maximumf %9, %11 : vector<128x128xf32>
    %c0_10 = arith.constant 0 : index
    %c0_11 = arith.constant 0 : index
    %13 = vector.load %arg5[%c0_10, %c0_11] : memref<128x128xbf16, #tpu.memory_space<vmem>>, vector<128x128xbf16>
    %14 = arith.extf %13 : vector<128x128xbf16> to vector<128x128xf32>
    %15 = arith.addf %12, %14 : vector<128x128xf32>
    %cst_12 = arith.constant dense<0xFF800000> : vector<128xf32>
    %16 = vector.multi_reduction <maximumf>, %15, %cst_12 [1] : vector<128x128xf32> to vector<128xf32>
    %17 = vector.shape_cast %16 : vector<128xf32> to vector<128x1xf32>
    %18 = vector.broadcast %17 : vector<128x1xf32> to vector<128x128xf32>
    %19 = arith.subf %15, %18 : vector<128x128xf32>
    %20 = math.exp %19 : vector<128x128xf32>
    %cst_13 = arith.constant dense<0.000000e+00> : vector<128xf32>
    %21 = vector.multi_reduction <add>, %20, %cst_13 [1] : vector<128x128xf32> to vector<128xf32>
    %22 = vector.shape_cast %21 : vector<128xf32> to vector<128x1xf32>
    %23 = tpu.reciprocal %22 {approx = true} : vector<128x1xf32> -> vector<128x1xf32>
    %24 = vector.broadcast %23 : vector<128x1xf32> to vector<128x128xf32>
    %25 = arith.mulf %20, %24 : vector<128x128xf32>
    %26 = arith.truncf %25 : vector<128x128xf32> to vector<128x128xbf16>
    %27 = arith.truncf %2 : vector<128x128xf32> to vector<128x128xbf16>
    %cst_14 = arith.constant dense<0.000000e+00> : vector<128x128xf32>
    %28 = tpu.matmul %26, %27, %cst_14 {dimension_numbers = #tpu.dot_dimension_numbers<[1], [0], [0], [1], [0, 0, 1, 1], [], []>} : vector<128x128xbf16>, vector<128x128xbf16>, vector<128x128xf32> -> vector<128x128xf32>
    %c0_15 = arith.constant 0 : index
    %c0_16 = arith.constant 0 : index
    %29 = vector.load %arg4[%c0_15, %c0_16] : memref<1x128xf32, #tpu.memory_space<vmem>>, vector<1x128xf32>
    %30 = vector.broadcast %29 : vector<1x128xf32> to vector<128x128xf32>
    %31 = arith.addf %28, %30 : vector<128x128xf32>
    %32 = arith.truncf %31 : vector<128x128xf32> to vector<128x128xbf16>
    %c0_17 = arith.constant 0 : index
    %c0_18 = arith.constant 0 : index
    %33 = vector.load %arg6[%c0_17, %c0_18] : memref<128x128xbf16, #tpu.memory_space<vmem>>, vector<128x128xbf16>
    tpu.vector_store %arg6[%c0_17, %c0_18], %32 {strides = array<i32>} : memref<128x128xbf16, #tpu.memory_space<vmem>>, vector<128x128xbf16>,
    return
  }
}

</mosaic_0001>

<llo_original>
// kernel: dggat_forward.3
$region0: #{dggat_forward.3}
  #allocation0 [shape = 'u32[]', space=smem, size = 0x4, offset = 0x4, fixed_abs, tag = 'smem constant byte address 0x4 - core index']
  #allocation1 [shape = 'u32[144,128]{1,0:T(1,128)}', space=vmem, size = 0x12000, scoped, tag = 'internal scratch']
  %s0 = inlined_call_operand.vmem [shape: bf16[8,128], index: 0, kind: input, shape index: {}]
  %s1 = inlined_call_operand.vmem [shape: bf16[128,128], index: 1, kind: input, shape index: {}]
  %s2 = inlined_call_operand.vmem [shape: f32[1,128], index: 2, kind: input, shape index: {}]
  %s3 = inlined_call_operand.vmem [shape: f32[1,128], index: 3, kind: input, shape index: {}]
  %s4 = inlined_call_operand.vmem [shape: f32[1,128], index: 4, kind: input, shape index: {}]
  %s5 = inlined_call_operand.vmem [shape: bf16[128,128], index: 5, kind: input, shape index: {}]
  %s6 = inlined_call_operand.vmem [shape: f32[1,128], index: 6, kind: input, shape index: {}]
  %s7 = inlined_call_operand.vmem [shape: f32[1,128], index: 7, kind: input, shape index: {}]
  %s8 = inlined_call_operand.vmem [shape: f32[1,128], index: 8, kind: input, shape index: {}]
  %s9 = inlined_call_operand.vmem [shape: bf16[128,128], index: 9, kind: input, shape index: {}]
  %s10 = inlined_call_operand.vmem [shape: f32[1,128], index: 10, kind: input, shape index: {}]
  %s11 = inlined_call_operand.hbm [shape: f32[8,128], index: 11, kind: output, shape index: {}]
  %s12 = sld [smem:[#allocation0]]
  $region54: #{dggat_forward.3} parent=0
    _
  %s14 = ssub.s32 1, %s12
  %s15 = scalar_select 0, %s14, %s12
  $region1: #{dggat_forward.3} parent=0
    #allocation2 [shape = 'u8[4096]{0}', space=vmem, size = 0x1000, scoped, tag = 'output window, operand 0, single buffered']
    #allocation3 [shape = 's32[1]{0}', space=sflag, size = 0x4, scoped, tag = 'scoped memory for dggat_forward.3']
    %16 = vsyncpa [#allocation3], 0
    // Predicated region
    $region2: #{dggat_forward.3} parent=1 // pred_check
      _
    $region3: #{dggat_forward.3} parent=1 // pred_check_branch
      %18 = sbr.rel (0) target = $region5
    $region4: #{dggat_forward.3} parent=1 // pred_region
      _
    $region5: #{dggat_forward.3} parent=1 // pred_fallthru
      _
    // Predicated region
    $region6: #{dggat_forward.3} parent=1 // pred_check
      _
    $region7: #{dggat_forward.3} parent=1 // pred_check_branch
      %20 = sbr.rel (0) target = $region9
    $region8: #{dggat_forward.3} parent=1 // pred_region
      _
    $region9: #{dggat_forward.3} parent=1 // pred_fallthru
      _
    // Predicated region
    $region10: #{dggat_forward.3} parent=1 // pred_check
      _
    $region11: #{dggat_forward.3} parent=1 // pred_check_branch
      %22 = sbr.rel (0) target = $region13
    $region12: #{dggat_forward.3} parent=1 // pred_region
      _
    $region13: #{dggat_forward.3} parent=1 // pred_fallthru
      _
    // Predicated region
    $region14: #{dggat_forward.3} parent=1 // pred_check
      _
    $region15: #{dggat_forward.3} parent=1 // pred_check_branch
      %24 = sbr.rel (0) target = $region17
    $region16: #{dggat_forward.3} parent=1 // pred_region
      _
    $region17: #{dggat_forward.3} parent=1 // pred_fallthru
      _
    // Predicated region
    $region18: #{dggat_forward.3} parent=1 // pred_check
      _
    $region19: #{dggat_forward.3} parent=1 // pred_check_branch
      %26 = sbr.rel (0) target = $region21
    $region20: #{dggat_forward.3} parent=1 // pred_region
      _
    $region21: #{dggat_forward.3} parent=1 // pred_fallthru
      _
    // Predicated region
    $region22: #{dggat_forward.3} parent=1 // pred_check
      _
    $region23: #{dggat_forward.3} parent=1 // pred_check_branch
      %28 = sbr.rel (0) target = $region25
    $region24: #{dggat_forward.3} parent=1 // pred_region
      _
    $region25: #{dggat_forward.3} parent=1 // pred_fallthru
      _
    // Predicated region
    $region26: #{dggat_forward.3} parent=1 // pred_check
      _
    $region27: #{dggat_forward.3} parent=1 // pred_check_branch
      %30 = sbr.rel (0) target = $region29
    $region28: #{dggat_forward.3} parent=1 // pred_region
      _
    $region29: #{dggat_forward.3} parent=1 // pred_fallthru
      _
    // Predicated region
    $region30: #{dggat_forward.3} parent=1 // pred_check
      _
    $region31: #{dggat_forward.3} parent=1 // pred_check_branch
      %32 = sbr.rel (0) target = $region33
    $region32: #{dggat_forward.3} parent=1 // pred_region
      _
    $region33: #{dggat_forward.3} parent=1 // pred_fallthru
      _
    // Predicated region
    $region34: #{dggat_forward.3} parent=1 // pred_check
      _
    $region35: #{dggat_forward.3} parent=1 // pred_check_branch
      %34 = sbr.rel (0) target = $region37
    $region36: #{dggat_forward.3} parent=1 // pred_region
      _
    $region37: #{dggat_forward.3} parent=1 // pred_fallthru
      _
    // Predicated region
    $region38: #{dggat_forward.3} parent=1 // pred_check
      _
    $region39: #{dggat_forward.3} parent=1 // pred_check_branch
      %36 = sbr.rel (0) target = $region41
    $region40: #{dggat_forward.3} parent=1 // pred_region
      _
    $region41: #{dggat_forward.3} parent=1 // pred_fallthru
      _
    // Predicated region
    $region42: #{dggat_forward.3} parent=1 // pred_check
      _
    $region43: #{dggat_forward.3} parent=1 // pred_check_branch
      %38 = sbr.rel (0) target = $region45
    $region44: #{dggat_forward.3} parent=1 // pred_region
      _
    $region45: #{dggat_forward.3} parent=1 // pred_fallthru
      _
    %v40 = vld [vmem:[%s0] sm:$0xf]
    %v41 = vld [vmem:[%s1] sm:$0xf]
    %v42 = vld [vmem:[%s1 + $0x4] sm:$0xf]
    %v43 = vld [vmem:[%s1 + $0x8] sm:$0xf]
    %v44 = vld [vmem:[%s1 + $0xc] sm:$0xf]
    %v45 = vld [vmem:[%s1 + $0x10] sm:$0xf]
    %v46 = vld [vmem:[%s1 + $0x14] sm:$0xf]
    %v47 = vld [vmem:[%s1 + $0x18] sm:$0xf]
    %v48 = vld [vmem:[%s1 + $0x1c] sm:$0xf]
    %v49 = vld [vmem:[%s1 + $0x20] sm:$0xf]
    %v50 = vld [vmem:[%s1 + $0x24] sm:$0xf]
    %v51 = vld [vmem:[%s1 + $0x28] sm:$0xf]
    %v52 = vld [vmem:[%s1 + $0x2c] sm:$0xf]
    %v53 = vld [vmem:[%s1 + $0x30] sm:$0xf]
    %v54 = vld [vmem:[%s1 + $0x34] sm:$0xf]
    %v55 = vld [vmem:[%s1 + $0x38] sm:$0xf]
    %v56 = vld [vmem:[%s1 + $0x3c] sm:$0xf]
    %v57 = vld [vmem:[%s2] sm:$0x1]
    %v59 = vlaneseq
    %v60 = vshrl.u32 %v59, 7
    %v61 = vsub.s32 0, %v60
    %v62 = vrot.slane %v57, %v61
    %v80 = vunpack.c.l.b16 %v41
    %v81 = vunpack.c.l.b16 %v42
    %v82 = vunpack.c.l.b16 %v43
    %v83 = vunpack.c.l.b16 %v44
    %v84 = vunpack.c.l.b16 %v45
    %v85 = vunpack.c.l.b16 %v46
    %v86 = vunpack.c.l.b16 %v47
    %v87 = vunpack.c.l.b16 %v48
    %v88 = vunpack.c.l.b16 %v49
    %v89 = vunpack.c.l.b16 %v50
    %v90 = vunpack.c.l.b16 %v51
    %v91 = vunpack.c.l.b16 %v52
    %v92 = vunpack.c.l.b16 %v53
    %v93 = vunpack.c.l.b16 %v54
    %v94 = vunpack.c.l.b16 %v55
    %v95 = vunpack.c.l.b16 %v56
    %v96 = vpack.c.b16 %v81, %v80
    %v97 = vpack.c.b16 %v83, %v82
    %v98 = vpack.c.b16 %v85, %v84
    %v99 = vpack.c.b16 %v87, %v86
    %v100 = vpack.c.b16 %v89, %v88
    %v101 = vpack.c.b16 %v91, %v90
    %v102 = vpack.c.b16 %v93, %v92
    %v103 = vpack.c.b16 %v95, %v94
    %112 = vmatprep.subr.bf16.mxu0 0
    %113 = vmatpush1.bf16.xpose.msra.mxu0 %v103
    %114 = vmatprep.subr.bf16.mxu0 0
    %115 = vmatpush1.bf16.xpose.msra.mxu0 %v102
    %116 = vmatprep.subr.bf16.mxu0 0
    %117 = vmatpush1.bf16.xpose.msra.mxu0 %v101
    %118 = vmatprep.subr.bf16.mxu0 0
    %119 = vmatpush1.bf16.xpose.msra.mxu0 %v100
    %120 = vmatprep.subr.bf16.mxu0 0
    %121 = vmatpush1.bf16.xpose.msra.mxu0 %v99
    %122 = vmatprep.subr.bf16.mxu0 0
    %123 = vmatpush1.bf16.xpose.msra.mxu0 %v98
    %124 = vmatprep.subr.bf16.mxu0 0
    %125 = vmatpush1.bf16.xpose.msra.mxu0 %v97
    %126 = vmatprep.subr.bf16.mxu0 0
    %127 = vmatpush1.bf16.xpose.msra.mxu0 %v96
    %128 = vmatprep.subr.bf16.mxu0 0
    %129 = vmatpush2.bf16.xpose.msra.mxu0 0
    %130 = vmatprep.subr.bf16.mxu0 0
    %131 = vmatpush2.bf16.xpose.msra.mxu0 0
    %132 = vmatprep.subr.bf16.mxu0 0
    %133 = vmatpush2.bf16.xpose.msra.mxu0 0
    %134 = vmatprep.subr.bf16.mxu0 0
    %135 = vmatpush2.bf16.xpose.msra.mxu0 0
    %136 = vmatprep.subr.bf16.mxu0 0
    %137 = vmatpush2.bf16.xpose.msra.mxu0 0
    %138 = vmatprep.subr.bf16.mxu0 0
    %139 = vmatpush2.bf16.xpose.msra.mxu0 0
    %140 = vmatprep.subr.bf16.mxu0 0
    %141 = vmatpush2.bf16.xpose.msra.mxu0 0
    %142 = vmatprep.subr.bf16.mxu0 0
    %143 = vmatpush2.bf16.xpose.msra.mxu0 0
    %144 = vmatprep.mubr.bf16.mxu0 0
    %145 = vmatmul.mubr.bf16.gmra.mxu0 %v40
    %v146 = vpop.f32.mrf.mxu0
    %v147 = vadd.f32 %v62, %v146
    %v148 = vpop.f32.mrf.mxu0
    %v149 = vpop.f32.mrf.mxu0
    %v150 = vpop.f32.mrf.mxu0
    %151 = vdwg.mxu0
    %v152 = vmax.f32 %v147, 0.0
    %153 = vadd.xlane.f32.xlu0 %v152
    %v154 = vpop.xlane.xlu0 %153
    %v155 = vrcp.pop 128.0
    %v156 = vmul.f32 %v154, %v155
    %v157 = vsub.f32 %v152, %v156
    %v158 = vmul.f32 %v157, %v157
    %159 = vadd.xlane.f32.xlu0 %v158
    %v160 = vpop.xlane.xlu0 %159
    %v161 = vmul.f32 %v160, %v155
    %v162 = vld [vmem:[%s3] sm:$0x1]
    %v164 = vlaneseq
    %v165 = vshrl.u32 %v164, 7
    %v166 = vsub.s32 0, %v165
    %v167 = vrot.slane %v162, %v166
    %v169 = vmul.f32 %v167, %v157
    %v170 = vadd.f32 %v161, 1e-05
    %v171 = vrsqrt.pop %v170
    %v172 = vmul.f32 %v169, %v171
    %v173 = vld [vmem:[%s4] sm:$0x1]
    %v175 = vlaneseq
    %v176 = vshrl.u32 %v175, 7
    %v177 = vsub.s32 0, %v176
    %v178 = vrot.slane %v173, %v177
    %v180 = vadd.f32 %v172, %v178
    %v181 = vpack.c.bf16 %v180, %v180
    %v182 = vld [vmem:[%s5] sm:$0xf]
    %v183 = vld [vmem:[%s5 + $0x4] sm:$0xf]
    %v184 = vld [vmem:[%s5 + $0x8] sm:$0xf]
    %v185 = vld [vmem:[%s5 + $0xc] sm:$0xf]
    %v186 = vld [vmem:[%s5 + $0x10] sm:$0xf]
    %v187 = vld [vmem:[%s5 + $0x14] sm:$0xf]
    %v188 = vld [vmem:[%s5 + $0x18] sm:$0xf]
    %v189 = vld [vmem:[%s5 + $0x1c] sm:$0xf]
    %v190 = vld [vmem:[%s5 + $0x20] sm:$0xf]
    %v191 = vld [vmem:[%s5 + $0x24] sm:$0xf]
    %v192 = vld [vmem:[%s5 + $0x28] sm:$0xf]
    %v193 = vld [vmem:[%s5 + $0x2c] sm:$0xf]
    %v194 = vld [vmem:[%s5 + $0x30] sm:$0xf]
    %v195 = vld [vmem:[%s5 + $0x34] sm:$0xf]
    %v196 = vld [vmem:[%s5 + $0x38] sm:$0xf]
    %v197 = vld [vmem:[%s5 + $0x3c] sm:$0xf]
    %v198 = vld [vmem:[%s6] sm:$0x1]
    %v200 = vlaneseq
    %v201 = vshrl.u32 %v200, 7
    %v202 = vsub.s32 0, %v201
    %v203 = vrot.slane %v198, %v202
    %v221 = vunpack.c.l.b16 %v182
    %v222 = vunpack.c.l.b16 %v183
    %v223 = vunpack.c.l.b16 %v184
    %v224 = vunpack.c.l.b16 %v185
    %v225 = vunpack.c.l.b16 %v186
    %v226 = vunpack.c.l.b16 %v187
    %v227 = vunpack.c.l.b16 %v188
    %v228 = vunpack.c.l.b16 %v189
    %v229 = vunpack.c.l.b16 %v190
    %v230 = vunpack.c.l.b16 %v191
    %v231 = vunpack.c.l.b16 %v192
    %v232 = vunpack.c.l.b16 %v193
    %v233 = vunpack.c.l.b16 %v194
    %v234 = vunpack.c.l.b16 %v195
    %v235 = vunpack.c.l.b16 %v196
    %v236 = vunpack.c.l.b16 %v197
    %v237 = vpack.c.b16 %v222, %v221
    %v238 = vpack.c.b16 %v224, %v223
    %v239 = vpack.c.b16 %v226, %v225
    %v240 = vpack.c.b16 %v228, %v227
    %v241 = vpack.c.b16 %v230, %v229
    %v242 = vpack.c.b16 %v232, %v231
    %v243 = vpack.c.b16 %v234, %v233
    %v244 = vpack.c.b16 %v236, %v235
    %253 = vmatprep.subr.bf16.mxu0 0
    %254 = vmatpush1.bf16.xpose.msra.mxu0 %v244
    %255 = vmatprep.subr.bf16.mxu0 0
    %256 = vmatpush1.bf16.xpose.msra.mxu0 %v243
    %257 = vmatprep.subr.bf16.mxu0 0
    %258 = vmatpush1.bf16.xpose.msra.mxu0 %v242
    %259 = vmatprep.subr.bf16.mxu0 0
    %260 = vmatpush1.bf16.xpose.msra.mxu0 %v241
    %261 = vmatprep.subr.bf16.mxu0 0
    %262 = vmatpush1.bf16.xpose.msra.mxu0 %v240
    %263 = vmatprep.subr.bf16.mxu0 0
    %264 = vmatpush1.bf16.xpose.msra.mxu0 %v239
    %265 = vmatprep.subr.bf16.mxu0 0
    %266 = vmatpush1.bf16.xpose.msra.mxu0 %v238
    %267 = vmatprep.subr.bf16.mxu0 0
    %268 = vmatpush1.bf16.xpose.msra.mxu0 %v237
    %269 = vmatprep.subr.bf16.mxu0 0
    %270 = vmatpush2.bf16.xpose.msra.mxu0 0
    %271 = vmatprep.subr.bf16.mxu0 0
    %272 = vmatpush2.bf16.xpose.msra.mxu0 0
    %273 = vmatprep.subr.bf16.mxu0 0
    %274 = vmatpush2.bf16.xpose.msra.mxu0 0
    %275 = vmatprep.subr.bf16.mxu0 0
    %276 = vmatpush2.bf16.xpose.msra.mxu0 0
    %277 = vmatprep.subr.bf16.mxu0 0
    %278 = vmatpush2.bf16.xpose.msra.mxu0 0
    %279 = vmatprep.subr.bf16.mxu0 0
    %280 = vmatpush2.bf16.xpose.msra.mxu0 0
    %281 = vmatprep.subr.bf16.mxu0 0
    %282 = vmatpush2.bf16.xpose.msra.mxu0 0
    %283 = vmatprep.subr.bf16.mxu0 0
    %284 = vmatpush2.bf16.xpose.msra.mxu0 0
    %285 = vmatprep.mubr.bf16.mxu0 0
    %286 = vmatmul.mubr.bf16.gmra.mxu0 %v181
    %v287 = vpop.f32.mrf.mxu0
    %v288 = vadd.f32 %v203, %v287
    %v289 = vpop.f32.mrf.mxu0
    %v290 = vpop.f32.mrf.mxu0
    %v291 = vpop.f32.mrf.mxu0
    %292 = vdwg.mxu0
    %v293 = vmax.f32 %v288, 0.0
    %294 = vadd.xlane.f32.xlu0 %v293
    %v295 = vpop.xlane.xlu0 %294
    %v296 = vmul.f32 %v295, %v155
    %v297 = vsub.f32 %v293, %v296
    %v298 = vmul.f32 %v297, %v297
    %299 = vadd.xlane.f32.xlu0 %v298
    %v300 = vpop.xlane.xlu0 %299
    %v301 = vmul.f32 %v300, %v155
    %v302 = vld [vmem:[%s7] sm:$0x1]
    %v304 = vlaneseq
    %v305 = vshrl.u32 %v304, 7
    %v306 = vsub.s32 0, %v305
    %v307 = vrot.slane %v302, %v306
    %v309 = vmul.f32 %v307, %v297
    %v310 = vadd.f32 %v301, 1e-05
    %v311 = vrsqrt.pop %v310
    %v312 = vmul.f32 %v309, %v311
    %v313 = vld [vmem:[%s8] sm:$0x1]
    %v315 = vlaneseq
    %v316 = vshrl.u32 %v315, 7
    %v317 = vsub.s32 0, %v316
    %v318 = vrot.slane %v313, %v317
    %v320 = vadd.f32 %v312, %v318
    %v321 = vadd.f32 %v180, %v320
    %v322 = vpack.c.bf16 %v321, %v321
    %v323 = vld [vmem:[%s9] sm:$0xf]
    %v324 = vld [vmem:[%s9 + $0x4] sm:$0xf]
    %v325 = vld [vmem:[%s9 + $0x8] sm:$0xf]
    %v326 = vld [vmem:[%s9 + $0xc] sm:$0xf]
    %v327 = vld [vmem:[%s9 + $0x10] sm:$0xf]
    %v328 = vld [vmem:[%s9 + $0x14] sm:$0xf]
    %v329 = vld [vmem:[%s9 + $0x18] sm:$0xf]
    %v330 = vld [vmem:[%s9 + $0x1c] sm:$0xf]
    %v331 = vld [vmem:[%s9 + $0x20] sm:$0xf]
    %v332 = vld [vmem:[%s9 + $0x24] sm:$0xf]
    %v333 = vld [vmem:[%s9 + $0x28] sm:$0xf]
    %v334 = vld [vmem:[%s9 + $0x2c] sm:$0xf]
    %v335 = vld [vmem:[%s9 + $0x30] sm:$0xf]
    %v336 = vld [vmem:[%s9 + $0x34] sm:$0xf]
    %v337 = vld [vmem:[%s9 + $0x38] sm:$0xf]
    %v338 = vld [vmem:[%s9 + $0x3c] sm:$0xf]
    %v339 = vld [vmem:[%s10] sm:$0x1]
    %v341 = vlaneseq
    %v342 = vshrl.u32 %v341, 7
    %v343 = vsub.s32 0, %v342
    %v344 = vrot.slane %v339, %v343
    %v362 = vunpack.c.l.b16 %v323
    %v363 = vunpack.c.l.b16 %v324
    %v364 = vunpack.c.l.b16 %v325
    %v365 = vunpack.c.l.b16 %v326
    %v366 = vunpack.c.l.b16 %v327
    %v367 = vunpack.c.l.b16 %v328
    %v368 = vunpack.c.l.b16 %v329
    %v369 = vunpack.c.l.b16 %v330
    %v370 = vunpack.c.l.b16 %v331
    %v371 = vunpack.c.l.b16 %v332
    %v372 = vunpack.c.l.b16 %v333
    %v373 = vunpack.c.l.b16 %v334
    %v374 = vunpack.c.l.b16 %v335
    %v375 = vunpack.c.l.b16 %v336
    %v376 = vunpack.c.l.b16 %v337
    %v377 = vunpack.c.l.b16 %v338
    %v378 = vpack.c.b16 %v363, %v362
    %v379 = vpack.c.b16 %v365, %v364
    %v380 = vpack.c.b16 %v367, %v366
    %v381 = vpack.c.b16 %v369, %v368
    %v382 = vpack.c.b16 %v371, %v370
    %v383 = vpack.c.b16 %v373, %v372
    %v384 = vpack.c.b16 %v375, %v374
    %v385 = vpack.c.b16 %v377, %v376
    %394 = vmatprep.subr.bf16.mxu0 0
    %395 = vmatpush1.bf16.xpose.msra.mxu0 %v385
    %396 = vmatprep.subr.bf16.mxu0 0
    %397 = vmatpush1.bf16.xpose.msra.mxu0 %v384
    %398 = vmatprep.subr.bf16.mxu0 0
    %399 = vmatpush1.bf16.xpose.msra.mxu0 %v383
    %400 = vmatprep.subr.bf16.mxu0 0
    %401 = vmatpush1.bf16.xpose.msra.mxu0 %v382
    %402 = vmatprep.subr.bf16.mxu0 0
    %403 = vmatpush1.bf16.xpose.msra.mxu0 %v381
    %404 = vmatprep.subr.bf16.mxu0 0
    %405 = vmatpush1.bf16.xpose.msra.mxu0 %v380
    %406 = vmatprep.subr.bf16.mxu0 0
    %407 = vmatpush1.bf16.xpose.msra.mxu0 %v379
    %408 = vmatprep.subr.bf16.mxu0 0
    %409 = vmatpush1.bf16.xpose.msra.mxu0 %v378
    %410 = vmatprep.subr.bf16.mxu0 0
    %411 = vmatpush2.bf16.xpose.msra.mxu0 0
    %412 = vmatprep.subr.bf16.mxu0 0
    %413 = vmatpush2.bf16.xpose.msra.mxu0 0
    %414 = vmatprep.subr.bf16.mxu0 0
    %415 = vmatpush2.bf16.xpose.msra.mxu0 0
    %416 = vmatprep.subr.bf16.mxu0 0
    %417 = vmatpush2.bf16.xpose.msra.mxu0 0
    %418 = vmatprep.subr.bf16.mxu0 0
    %419 = vmatpush2.bf16.xpose.msra.mxu0 0
    %420 = vmatprep.subr.bf16.mxu0 0
    %421 = vmatpush2.bf16.xpose.msra.mxu0 0
    %422 = vmatprep.subr.bf16.mxu0 0
    %423 = vmatpush2.bf16.xpose.msra.mxu0 0
    %424 = vmatprep.subr.bf16.mxu0 0
    %425 = vmatpush2.bf16.xpose.msra.mxu0 0
    %426 = vmatprep.mubr.bf16.mxu0 0
    %427 = vmatmul.mubr.bf16.gmra.mxu0 %v322
    %v428 = vpop.f32.mrf.mxu0
    %v429 = vadd.f32 %v344, %v428
    %v430 = vpop.f32.mrf.mxu0
    %v431 = vpop.f32.mrf.mxu0
    %v432 = vpop.f32.mrf.mxu0
    %433 = vdwg.mxu0
    %v434 = vxor.u32 %v429, 2147483648
    %v435 = vmul.f32 %v434, 1.442695
    %v436 = vpow.pop %v435
    %v437 = vadd.f32 %v436, 1.0
    %v438 = vrcp.pop %v437
    %v439 = vmul.f32 1.0, %v438
    %440 = vst [vmem:[#allocation2] sm:$0xff] %v439
    // Predicated region
    $region46: #{dggat_forward.3} parent=1 // pred_check
      _
    $region47: #{dggat_forward.3} parent=1 // pred_check_branch
      %442 = sbr.rel (0) target = $region49
    $region48: #{dggat_forward.3} parent=1 // pred_region
      %s444 = ssub.s32 128, 128
      %445 = vsyncadd [#allocation3], %s444
      %s447 = sshll.u32 [#allocation2], 4
      %s448 = int_to_ptr.vmem [resolvable:$true] %s447
      %450 = dma.vmem_to_hbm [thread:$0]  %s448, 128, %s11, [#allocation3]
    $region49: #{dggat_forward.3} parent=1 // pred_fallthru
      _
    // Predicated region
    $region50: #{dggat_forward.3} parent=1 // pred_check
      _
    $region51: #{dggat_forward.3} parent=1 // pred_check_branch
      %452 = sbr.rel (0) target = $region53
    $region52: #{dggat_forward.3} parent=1 // pred_region
      %453 = dma.done [#allocation3], 128
    $region53: #{dggat_forward.3} parent=1 // pred_fallthru
      _
    %454 = vsyncpa [#allocation3], 1

// kernel: dggat_forward.2
$region0: #{dggat_forward.2}
  #allocation0 [shape = 'u32[]', space=smem, size = 0x4, offset = 0x4, fixed_abs, tag = 'smem constant byte address 0x4 - core index']
  #allocation1 [shape = 'u32[144,128]{1,0:T(1,128)}', space=vmem, size = 0x12000, scoped, tag = 'internal scratch']
  %s0 = inlined_call_operand.hbm [shape: bf16[128,128], index: 0, kind: input, shape index: {}]
  %s1 = inlined_call_operand.hbm [shape: bf16[128,128], index: 1, kind: input, shape index: {}]
  %s2 = inlined_call_operand.vmem [shape: f32[1,128], index: 2, kind: input, shape index: {}]
  %s3 = inlined_call_operand.vmem [shape: f32[1,128], index: 3, kind: input, shape index: {}]
  %s4 = inlined_call_operand.vmem [shape: f32[1,128], index: 4, kind: input, shape index: {}]
  %s5 = inlined_call_operand.hbm [shape: bf16[128,128], index: 5, kind: input, shape index: {}]
  %s6 = inlined_call_operand.vmem [shape: bf16[128,128], index: 6, kind: output, shape index: {}]
  %s7 = sld [smem:[#allocation0]]
  $region46: #{dggat_forward.2} parent=0
    _
  %s9 = ssub.s32 1, %s7
  %s10 = scalar_select 0, %s9, %s7
  $region1: #{dggat_forward.2} parent=0
    #allocation2 [shape = 'u8[32768]{0}', space=vmem, size = 0x8000, scoped, tag = 'input window, operand 0, single buffered']
    #allocation3 [shape = 's32[1]{0}', space=sflag, size = 0x4, scoped, tag = 'scoped memory for dggat_forward.2']
    #allocation4 [shape = 'u8[32768]{0}', space=vmem, size = 0x8000, scoped, tag = 'input window, operand 1, single buffered']
    #allocation5 [shape = 's32[1]{0}', space=sflag, size = 0x4, scoped, tag = 'scoped memory for dggat_forward.2']
    #allocation6 [shape = 'u8[32768]{0}', space=vmem, size = 0x8000, scoped, tag = 'input window, operand 5, single buffered']
    %11 = vsyncpa [#allocation3], 0
    %12 = vsyncpa [#allocation5], 0
    // Predicated region
    $region2: #{dggat_forward.2} parent=1 // pred_check
      _
    $region3: #{dggat_forward.2} parent=1 // pred_check_branch
      %14 = sbr.rel (0) target = $region5
    $region4: #{dggat_forward.2} parent=1 // pred_region
      %s16 = ssub.s32 1024, 1024
      %17 = vsyncadd [#allocation3], %s16
      %s18 = sshll.u32 [#allocation2], 4
      %s19 = int_to_ptr.vmem [resolvable:$true] %s18
      %24 = dma.hbm_to_vmem [thread:$0]  %s0, 1024, %s19, [#allocation3], 64, 64, 4
    $region5: #{dggat_forward.2} parent=1 // pred_fallthru
      _
    // Predicated region
    $region6: #{dggat_forward.2} parent=1 // pred_check
      _
    $region7: #{dggat_forward.2} parent=1 // pred_check_branch
      %26 = sbr.rel (0) target = $region9
    $region8: #{dggat_forward.2} parent=1 // pred_region
      %s28 = ssub.s32 1024, 1024
      %29 = vsyncadd [#allocation5], %s28
      %s30 = sshll.u32 [#allocation4], 4
      %s31 = int_to_ptr.vmem [resolvable:$true] %s30
      %36 = dma.hbm_to_vmem [thread:$0]  %s1, 1024, %s31, [#allocation5], 64, 64, 4
    $region9: #{dggat_forward.2} parent=1 // pred_fallthru
      _
    // Predicated region
    $region10: #{dggat_forward.2} parent=1 // pred_check
      _
    $region11: #{dggat_forward.2} parent=1 // pred_check_branch
      %38 = sbr.rel (0) target = $region13
    $region12: #{dggat_forward.2} parent=1 // pred_region
      _
    $region13: #{dggat_forward.2} parent=1 // pred_fallthru
      _
    // Predicated region
    $region14: #{dggat_forward.2} parent=1 // pred_check
      _
    $region15: #{dggat_forward.2} parent=1 // pred_check_branch
      %40 = sbr.rel (0) target = $region17
    $region16: #{dggat_forward.2} parent=1 // pred_region
      _
    $region17: #{dggat_forward.2} parent=1 // pred_fallthru
      _
    // Predicated region
    $region18: #{dggat_forward.2} parent=1 // pred_check
      _
    $region19: #{dggat_forward.2} parent=1 // pred_check_branch
      %42 = sbr.rel (0) target = $region21
    $region20: #{dggat_forward.2} parent=1 // pred_region
      _
    $region21: #{dggat_forward.2} parent=1 // pred_fallthru
      _
    // Predicated region
    $region22: #{dggat_forward.2} parent=1 // pred_check
      _
    $region23: #{dggat_forward.2} parent=1 // pred_check_branch
      %44 = sbr.rel (0) target = $region25
    $region24: #{dggat_forward.2} parent=1 // pred_region
      %s46 = ssub.s32 1024, 1024
      %47 = vsyncadd [#allocation5], %s46
      %s48 = sshll.u32 [#allocation6], 4
      %s49 = int_to_ptr.vmem [resolvable:$true] %s48
      %54 = dma.hbm_to_vmem [thread:$0]  %s5, 1024, %s49, [#allocation5], 64, 64, 4
    $region25: #{dggat_forward.2} parent=1 // pred_fallthru
      _
    // Predicated region
    $region26: #{dggat_forward.2} parent=1 // pred_check
      _
    $region27: #{dggat_forward.2} parent=1 // pred_check_branch
      %56 = sbr.rel (0) target = $region29
    $region28: #{dggat_forward.2} parent=1 // pred_region
      %57 = dma.done [#allocation3], 1024
    $region29: #{dggat_forward.2} parent=1 // pred_fallthru
      _
    // Predicated region
    $region30: #{dggat_forward.2} parent=1 // pred_check
      _
    $region31: #{dggat_forward.2} parent=1 // pred_check_branch
      %59 = sbr.rel (0) target = $region33
    $region32: #{dggat_forward.2} parent=1 // pred_region
      %60 = dma.done [#allocation5], 1024
    $region33: #{dggat_forward.2} parent=1 // pred_fallthru
      _
    // Predicated region
    $region34: #{dggat_forward.2} parent=1 // pred_check
      _
    $region35: #{dggat_forward.2} parent=1 // pred_check_branch
      %62 = sbr.rel (0) target = $region37
    $region36: #{dggat_forward.2} parent=1 // pred_region
      %63 = dma.done [#allocation5], 1024
    $region37: #{dggat_forward.2} parent=1 // pred_fallthru
      _
    %v65 = vld [vmem:[#allocation2] sm:$0xf]
    %v66 = vld [vmem:[#allocation2 + $0x4] sm:$0xf]
    %v67 = vld [vmem:[#allocation2 + $0x8] sm:$0xf]
    %v68 = vld [vmem:[#allocation2 + $0xc] sm:$0xf]
    %v69 = vld [vmem:[#allocation2 + $0x10] sm:$0xf]
    %v70 = vld [vmem:[#allocation2 + $0x14] sm:$0xf]
    %v71 = vld [vmem:[#allocation2 + $0x18] sm:$0xf]
    %v72 = vld [vmem:[#allocation2 + $0x1c] sm:$0xf]
    %v73 = vld [vmem:[#allocation2 + $0x20] sm:$0xf]
    %v74 = vld [vmem:[#allocation2 + $0x24] sm:$0xf]
    %v75 = vld [vmem:[#allocation2 + $0x28] sm:$0xf]
    %v76 = vld [vmem:[#allocation2 + $0x2c] sm:$0xf]
    %v77 = vld [vmem:[#allocation2 + $0x30] sm:$0xf]
    %v78 = vld [vmem:[#allocation2 + $0x34] sm:$0xf]
    %v79 = vld [vmem:[#allocation2 + $0x38] sm:$0xf]
    %v80 = vld [vmem:[#allocation2 + $0x3c] sm:$0xf]
    %v81 = vld [vmem:[#allocation4] sm:$0xf]
    %v82 = vld [vmem:[#allocation4 + $0x4] sm:$0xf]
    %v83 = vld [vmem:[#allocation4 + $0x8] sm:$0xf]
    %v84 = vld [vmem:[#allocation4 + $0xc] sm:$0xf]
    %v85 = vld [vmem:[#allocation4 + $0x10] sm:$0xf]
    %v86 = vld [vmem:[#allocation4 + $0x14] sm:$0xf]
    %v87 = vld [vmem:[#allocation4 + $0x18] sm:$0xf]
    %v88 = vld [vmem:[#allocation4 + $0x1c] sm:$0xf]
    %v89 = vld [vmem:[#allocation4 + $0x20] sm:$0xf]
    %v90 = vld [vmem:[#allocation4 + $0x24] sm:$0xf]
    %v91 = vld [vmem:[#allocation4 + $0x28] sm:$0xf]
    %v92 = vld [vmem:[#allocation4 + $0x2c] sm:$0xf]
    %v93 = vld [vmem:[#allocation4 + $0x30] sm:$0xf]
    %v94 = vld [vmem:[#allocation4 + $0x34] sm:$0xf]
    %v95 = vld [vmem:[#allocation4 + $0x38] sm:$0xf]
    %v96 = vld [vmem:[#allocation4 + $0x3c] sm:$0xf]
    %v113 = vunpack.c.l.b16 %v65
    %v114 = vunpack.c.l.b16 %v66
    %v115 = vunpack.c.l.b16 %v67
    %v116 = vunpack.c.l.b16 %v68
    %v117 = vunpack.c.l.b16 %v69
    %v118 = vunpack.c.l.b16 %v70
    %v119 = vunpack.c.l.b16 %v71
    %v120 = vunpack.c.l.b16 %v72
    %v121 = vunpack.c.l.b16 %v73
    %v122 = vunpack.c.l.b16 %v74
    %v123 = vunpack.c.l.b16 %v75
    %v124 = vunpack.c.l.b16 %v76
    %v125 = vunpack.c.l.b16 %v77
    %v126 = vunpack.c.l.b16 %v78
    %v127 = vunpack.c.l.b16 %v79
    %v128 = vunpack.c.l.b16 %v80
    %v129 = vpack.c.b16 %v114, %v113
    %v130 = vpack.c.b16 %v116, %v115
    %v131 = vpack.c.b16 %v118, %v117
    %v132 = vpack.c.b16 %v120, %v119
    %v133 = vpack.c.b16 %v122, %v121
    %v134 = vpack.c.b16 %v124, %v123
    %v135 = vpack.c.b16 %v126, %v125
    %v136 = vpack.c.b16 %v128, %v127
    %v161 = vunpack.c.l.b16 %v81
    %v162 = vunpack.c.l.b16 %v82
    %v163 = vunpack.c.l.b16 %v83
    %v164 = vunpack.c.l.b16 %v84
    %v165 = vunpack.c.l.b16 %v85
    %v166 = vunpack.c.l.b16 %v86
    %v167 = vunpack.c.l.b16 %v87
    %v168 = vunpack.c.l.b16 %v88
    %v169 = vunpack.c.l.b16 %v89
    %v170 = vunpack.c.l.b16 %v90
    %v171 = vunpack.c.l.b16 %v91
    %v172 = vunpack.c.l.b16 %v92
    %v173 = vunpack.c.l.b16 %v93
    %v174 = vunpack.c.l.b16 %v94
    %v175 = vunpack.c.l.b16 %v95
    %v176 = vunpack.c.l.b16 %v96
    %v177 = vpack.c.b16 %v162, %v161
    %v178 = vpack.c.b16 %v164, %v163
    %v179 = vpack.c.b16 %v166, %v165
    %v180 = vpack.c.b16 %v168, %v167
    %v181 = vpack.c.b16 %v170, %v169
    %v182 = vpack.c.b16 %v172, %v171
    %v183 = vpack.c.b16 %v174, %v173
    %v184 = vpack.c.b16 %v176, %v175
    %193 = vmatprep.subr.bf16.mxu0 0
    %194 = vmatpush1.bf16.xpose.msra.mxu0 %v184
    %195 = vmatprep.subr.bf16.mxu0 0
    %196 = vmatpush1.bf16.xpose.msra.mxu0 %v183
    %197 = vmatprep.subr.bf16.mxu0 0
    %198 = vmatpush1.bf16.xpose.msra.mxu0 %v182
    %199 = vmatprep.subr.bf16.mxu0 0
    %200 = vmatpush1.bf16.xpose.msra.mxu0 %v181
    %201 = vmatprep.subr.bf16.mxu0 0
    %202 = vmatpush1.bf16.xpose.msra.mxu0 %v180
    %203 = vmatprep.subr.bf16.mxu0 0
    %204 = vmatpush1.bf16.xpose.msra.mxu0 %v179
    %205 = vmatprep.subr.bf16.mxu0 0
    %206 = vmatpush1.bf16.xpose.msra.mxu0 %v178
    %207 = vmatprep.subr.bf16.mxu0 0
    %208 = vmatpush1.bf16.xpose.msra.mxu0 %v177
    %209 = vmatprep.subr.bf16.mxu0 0
    %210 = vmatpush2.bf16.xpose.msra.mxu0 0
    %211 = vmatprep.subr.bf16.mxu0 0
    %212 = vmatpush2.bf16.xpose.msra.mxu0 0
    %213 = vmatprep.subr.bf16.mxu0 0
    %214 = vmatpush2.bf16.xpose.msra.mxu0 0
    %215 = vmatprep.subr.bf16.mxu0 0
    %216 = vmatpush2.bf16.xpose.msra.mxu0 0
    %217 = vmatprep.subr.bf16.mxu0 0
    %218 = vmatpush2.bf16.xpose.msra.mxu0 0
    %219 = vmatprep.subr.bf16.mxu0 0
    %220 = vmatpush2.bf16.xpose.msra.mxu0 0
    %221 = vmatprep.subr.bf16.mxu0 0
    %222 = vmatpush2.bf16.xpose.msra.mxu0 0
    %223 = vmatprep.subr.bf16.mxu0 0
    %224 = vmatpush2.bf16.xpose.msra.mxu0 0
    %225 = vmatprep.mubr.bf16.mxu0 0
    %226 = vmatmul.mubr.bf16.gmra.mxu0 %v129
    %v227 = vpop.f32.mrf.mxu0
    %v228 = vadd.f32 0.0, %v227
    %v229 = vpop.f32.mrf.mxu0
    %v230 = vpop.f32.mrf.mxu0
    %v231 = vadd.f32 0.0, %v230
    %v232 = vpop.f32.mrf.mxu0
    %233 = vmatprep.mubr.bf16.mxu0 0
    %234 = vmatmul.mubr.bf16.gmra.mxu0 %v130
    %v235 = vpop.f32.mrf.mxu0
    %v236 = vadd.f32 0.0, %v235
    %v237 = vpop.f32.mrf.mxu0
    %v238 = vpop.f32.mrf.mxu0
    %v239 = vadd.f32 0.0, %v238
    %v240 = vpop.f32.mrf.mxu0
    %241 = vmatprep.mubr.bf16.mxu0 0
    %242 = vmatmul.mubr.bf16.gmra.mxu0 %v131
    %v243 = vpop.f32.mrf.mxu0
    %v244 = vadd.f32 0.0, %v243
    %v245 = vpop.f32.mrf.mxu0
    %v246 = vpop.f32.mrf.mxu0
    %v247 = vadd.f32 0.0, %v246
    %v248 = vpop.f32.mrf.mxu0
    %249 = vmatprep.mubr.bf16.mxu0 0
    %250 = vmatmul.mubr.bf16.gmra.mxu0 %v132
    %v251 = vpop.f32.mrf.mxu0
    %v252 = vadd.f32 0.0, %v251
    %v253 = vpop.f32.mrf.mxu0
    %v254 = vpop.f32.mrf.mxu0
    %v255 = vadd.f32 0.0, %v254
    %v256 = vpop.f32.mrf.mxu0
    %257 = vmatprep.mubr.bf16.mxu0 0
    %258 = vmatmul.mubr.bf16.gmra.mxu0 %v133
    %v259 = vpop.f32.mrf.mxu0
    %v260 = vadd.f32 0.0, %v259
    %v261 = vpop.f32.mrf.mxu0
    %v262 = vpop.f32.mrf.mxu0
    %v263 = vadd.f32 0.0, %v262
    %v264 = vpop.f32.mrf.mxu0
    %265 = vmatprep.mubr.bf16.mxu0 0
    %266 = vmatmul.mubr.bf16.gmra.mxu0 %v134
    %v267 = vpop.f32.mrf.mxu0
    %v268 = vadd.f32 0.0, %v267
    %v269 = vpop.f32.mrf.mxu0
    %v270 = vpop.f32.mrf.mxu0
    %v271 = vadd.f32 0.0, %v270
    %v272 = vpop.f32.mrf.mxu0
    %273 = vmatprep.mubr.bf16.mxu0 0
    %274 = vmatmul.mubr.bf16.gmra.mxu0 %v135
    %v275 = vpop.f32.mrf.mxu0
    %v276 = vadd.f32 0.0, %v275
    %v277 = vpop.f32.mrf.mxu0
    %v278 = vpop.f32.mrf.mxu0
    %v279 = vadd.f32 0.0, %v278
    %v280 = vpop.f32.mrf.mxu0
    %281 = vmatprep.mubr.bf16.mxu0 0
    %282 = vmatmul.mubr.bf16.gmra.mxu0 %v136
    %v283 = vpop.f32.mrf.mxu0
    %v284 = vadd.f32 0.0, %v283
    %v285 = vpop.f32.mrf.mxu0
    %v286 = vpop.f32.mrf.mxu0
    %v287 = vadd.f32 0.0, %v286
    %v288 = vpop.f32.mrf.mxu0
    %289 = vdwg.mxu0
    %v290 = vld [vmem:[%s2] sm:$0x1]
    %291 = vmatprep.subr.mxu0 0.0
    %292 = vmatpush1.xpose.msra.mxu0 %v287
    %293 = vmatprep.subr.mxu0 0.0
    %294 = vmatpush1.xpose.msra.mxu0 %v284
    %295 = vmatprep.subr.mxu0 0.0
    %296 = vmatpush1.xpose.msra.mxu0 %v279
    %297 = vmatprep.subr.mxu0 0.0
    %298 = vmatpush1.xpose.msra.mxu0 %v276
    %299 = vmatprep.subr.mxu0 0.0
    %300 = vmatpush1.xpose.msra.mxu0 %v271
    %301 = vmatprep.subr.mxu0 0.0
    %302 = vmatpush1.xpose.msra.mxu0 %v268
    %303 = vmatprep.subr.mxu0 0.0
    %304 = vmatpush1.xpose.msra.mxu0 %v263
    %305 = vmatprep.subr.mxu0 0.0
    %306 = vmatpush1.xpose.msra.mxu0 %v260
    %307 = vmatprep.subr.mxu0 0.0
    %308 = vmatpush1.xpose.msra.mxu0 %v255
    %309 = vmatprep.subr.mxu0 0.0
    %310 = vmatpush1.xpose.msra.mxu0 %v252
    %311 = vmatprep.subr.mxu0 0.0
    %312 = vmatpush1.xpose.msra.mxu0 %v247
    %313 = vmatprep.subr.mxu0 0.0
    %314 = vmatpush1.xpose.msra.mxu0 %v244
    %315 = vmatprep.subr.mxu0 0.0
    %316 = vmatpush1.xpose.msra.mxu0 %v239
    %317 = vmatprep.subr.mxu0 0.0
    %318 = vmatpush1.xpose.msra.mxu0 %v236
    %319 = vmatprep.subr.mxu0 0.0
    %320 = vmatpush1.xpose.msra.mxu0 %v231
    %321 = vmatprep.subr.mxu0 0.0
    %322 = vmatpush1.xpose.msra.mxu0 %v228
    %323 = vmatprep.subr.mxu0 0.0
    %324 = vmatpush2.xpose.msra.mxu0 0.0
    %325 = vmatprep.subr.mxu0 0.0
    %326 = vmatpush2.xpose.msra.mxu0 0.0
    %327 = vmatprep.subr.mxu0 0.0
    %328 = vmatpush2.xpose.msra.mxu0 0.0
    %329 = vmatprep.subr.mxu0 0.0
    %330 = vmatpush2.xpose.msra.mxu0 0.0
    %331 = vmatprep.subr.mxu0 0.0
    %332 = vmatpush2.xpose.msra.mxu0 0.0
    %333 = vmatprep.subr.mxu0 0.0
    %334 = vmatpush2.xpose.msra.mxu0 0.0
    %335 = vmatprep.subr.mxu0 0.0
    %336 = vmatpush2.xpose.msra.mxu0 0.0
    %337 = vmatprep.subr.mxu0 0.0
    %338 = vmatpush2.xpose.msra.mxu0 0.0
    %339 = vmatprep.subr.mxu0 0.0
    %340 = vmatpush2.xpose.msra.mxu0 0.0
    %341 = vmatprep.subr.mxu0 0.0
    %342 = vmatpush2.xpose.msra.mxu0 0.0
    %343 = vmatprep.subr.mxu0 0.0
    %344 = vmatpush2.xpose.msra.mxu0 0.0
    %345 = vmatprep.subr.mxu0 0.0
    %346 = vmatpush2.xpose.msra.mxu0 0.0
    %347 = vmatprep.subr.mxu0 0.0
    %348 = vmatpush2.xpose.msra.mxu0 0.0
    %349 = vmatprep.subr.mxu0 0.0
    %350 = vmatpush2.xpose.msra.mxu0 0.0
    %351 = vmatprep.subr.mxu0 0.0
    %352 = vmatpush2.xpose.msra.mxu0 0.0
    %353 = vmatprep.subr.mxu0 0.0
    %354 = vmatpush2.xpose.msra.mxu0 0.0
    %355 = vmatprep.mubr.f32.mxu0 0.0
    %356 = vmatmul.mubr.f32.gmra.mxu0 %v290
    %v357 = vpop.f32.mrf.mxu0
    %v358 = vadd.f32 0.0, %v357
    %v359 = vpop.f32.mrf.mxu0
    %360 = vdwg.mxu0
    %v361 = vld [vmem:[%s3] sm:$0x1]
    %v363 = vlaneseq
    %v364 = vshrl.u32 %v363, 7
    %v365 = vsub.s32 0, %v364
    %v366 = vrot.slane %v361, %v365
    %v368 = vmul.f32 %v228, %v366
    %v369 = vmul.f32 %v231, %v366
    %v370 = vmul.f32 %v236, %v366
    %v371 = vmul.f32 %v239, %v366
    %v372 = vmul.f32 %v244, %v366
    %v373 = vmul.f32 %v247, %v366
    %v374 = vmul.f32 %v252, %v366
    %v375 = vmul.f32 %v255, %v366
    %v376 = vmul.f32 %v260, %v366
    %v377 = vmul.f32 %v263, %v366
    %v378 = vmul.f32 %v268, %v366
    %v379 = vmul.f32 %v271, %v366
    %v380 = vmul.f32 %v276, %v366
    %v381 = vmul.f32 %v279, %v366
    %v382 = vmul.f32 %v284, %v366
    %v383 = vmul.f32 %v287, %v366
    %384 = vadd.xlane.f32.xlu0 %v368
    %v385 = vpop.xlane.xlu0 %384
    %386 = vadd.xlane.f32.xlu0 %v369
    %v387 = vpop.xlane.xlu0 %386
    %388 = vadd.xlane.f32.xlu0 %v370
    %v389 = vpop.xlane.xlu0 %388
    %390 = vadd.xlane.f32.xlu0 %v371
    %v391 = vpop.xlane.xlu0 %390
    %392 = vadd.xlane.f32.xlu0 %v372
    %v393 = vpop.xlane.xlu0 %392
    %394 = vadd.xlane.f32.xlu0 %v373
    %v395 = vpop.xlane.xlu0 %394
    %396 = vadd.xlane.f32.xlu0 %v374
    %v397 = vpop.xlane.xlu0 %396
    %398 = vadd.xlane.f32.xlu0 %v375
    %v399 = vpop.xlane.xlu0 %398
    %400 = vadd.xlane.f32.xlu0 %v376
    %v401 = vpop.xlane.xlu0 %400
    %402 = vadd.xlane.f32.xlu0 %v377
    %v403 = vpop.xlane.xlu0 %402
    %404 = vadd.xlane.f32.xlu0 %v378
    %v405 = vpop.xlane.xlu0 %404
    %406 = vadd.xlane.f32.xlu0 %v379
    %v407 = vpop.xlane.xlu0 %406
    %408 = vadd.xlane.f32.xlu0 %v380
    %v409 = vpop.xlane.xlu0 %408
    %410 = vadd.xlane.f32.xlu0 %v381
    %v411 = vpop.xlane.xlu0 %410
    %412 = vadd.xlane.f32.xlu0 %v382
    %v413 = vpop.xlane.xlu0 %412
    %414 = vadd.xlane.f32.xlu0 %v383
    %v415 = vpop.xlane.xlu0 %414
    %v416 = vlaneseq
    %v417 = vshrl.u32 %v416, 7
    %v418 = vsub.s32 0, %v417
    %v419 = vrot.slane %v358, %v418
    %v420 = vadd.f32 %v385, %v419
    %v421 = vadd.f32 %v387, %v419
    %v422 = vadd.f32 %v389, %v419
    %v423 = vadd.f32 %v391, %v419
    %v424 = vadd.f32 %v393, %v419
    %v425 = vadd.f32 %v395, %v419
    %v426 = vadd.f32 %v397, %v419
    %v427 = vadd.f32 %v399, %v419
    %v428 = vadd.f32 %v401, %v419
    %v429 = vadd.f32 %v403, %v419
    %v430 = vadd.f32 %v405, %v419
    %v431 = vadd.f32 %v407, %v419
    %v432 = vadd.f32 %v409, %v419
    %v433 = vadd.f32 %v411, %v419
    %v434 = vadd.f32 %v413, %v419
    %v435 = vadd.f32 %v415, %v419
    %v436 = vmul.f32 %v420, 0.2
    %v437 = vmul.f32 %v421, 0.2
    %v438 = vmul.f32 %v422, 0.2
    %v439 = vmul.f32 %v423, 0.2
    %v440 = vmul.f32 %v424, 0.2
    %v441 = vmul.f32 %v425, 0.2
    %v442 = vmul.f32 %v426, 0.2
    %v443 = vmul.f32 %v427, 0.2
    %v444 = vmul.f32 %v428, 0.2
    %v445 = vmul.f32 %v429, 0.2
    %v446 = vmul.f32 %v430, 0.2
    %v447 = vmul.f32 %v431, 0.2
    %v448 = vmul.f32 %v432, 0.2
    %v449 = vmul.f32 %v433, 0.2
    %v450 = vmul.f32 %v434, 0.2
    %v451 = vmul.f32 %v435, 0.2
    %v452 = vmax.f32 %v420, %v436
    %v453 = vmax.f32 %v421, %v437
    %v454 = vmax.f32 %v422, %v438
    %v455 = vmax.f32 %v423, %v439
    %v456 = vmax.f32 %v424, %v440
    %v457 = vmax.f32 %v425, %v441
    %v458 = vmax.f32 %v426, %v442
    %v459 = vmax.f32 %v427, %v443
    %v460 = vmax.f32 %v428, %v444
    %v461 = vmax.f32 %v429, %v445
    %v462 = vmax.f32 %v430, %v446
    %v463 = vmax.f32 %v431, %v447
    %v464 = vmax.f32 %v432, %v448
    %v465 = vmax.f32 %v433, %v449
    %v466 = vmax.f32 %v434, %v450
    %v467 = vmax.f32 %v435, %v451
    %v468 = vld [vmem:[#allocation6] sm:$0xf]
    %v469 = vld [vmem:[#allocation6 + $0x4] sm:$0xf]
    %v470 = vld [vmem:[#allocation6 + $0x8] sm:$0xf]
    %v471 = vld [vmem:[#allocation6 + $0xc] sm:$0xf]
    %v472 = vld [vmem:[#allocation6 + $0x10] sm:$0xf]
    %v473 = vld [vmem:[#allocation6 + $0x14] sm:$0xf]
    %v474 = vld [vmem:[#allocation6 + $0x18] sm:$0xf]
    %v475 = vld [vmem:[#allocation6 + $0x1c] sm:$0xf]
    %v476 = vld [vmem:[#allocation6 + $0x20] sm:$0xf]
    %v477 = vld [vmem:[#allocation6 + $0x24] sm:$0xf]
    %v478 = vld [vmem:[#allocation6 + $0x28] sm:$0xf]
    %v479 = vld [vmem:[#allocation6 + $0x2c] sm:$0xf]
    %v480 = vld [vmem:[#allocation6 + $0x30] sm:$0xf]
    %v481 = vld [vmem:[#allocation6 + $0x34] sm:$0xf]
    %v482 = vld [vmem:[#allocation6 + $0x38] sm:$0xf]
    %v483 = vld [vmem:[#allocation6 + $0x3c] sm:$0xf]
    %v484 = vunpack.c.l.bf16 %v468
    %v485 = vunpack.c.l.bf16 %v469
    %v486 = vunpack.c.l.bf16 %v470
    %v487 = vunpack.c.l.bf16 %v471
    %v488 = vunpack.c.l.bf16 %v472
    %v489 = vunpack.c.l.bf16 %v473
    %v490 = vunpack.c.l.bf16 %v474
    %v491 = vunpack.c.l.bf16 %v475
    %v492 = vunpack.c.l.bf16 %v476
    %v493 = vunpack.c.l.bf16 %v477
    %v494 = vunpack.c.l.bf16 %v478
    %v495 = vunpack.c.l.bf16 %v479
    %v496 = vunpack.c.l.bf16 %v480
    %v497 = vunpack.c.l.bf16 %v481
    %v498 = vunpack.c.l.bf16 %v482
    %v499 = vunpack.c.l.bf16 %v483
    %v500 = vadd.f32 %v452, %v484
    %v501 = vadd.f32 %v453, %v485
    %v502 = vadd.f32 %v454, %v486
    %v503 = vadd.f32 %v455, %v487
    %v504 = vadd.f32 %v456, %v488
    %v505 = vadd.f32 %v457, %v489
    %v506 = vadd.f32 %v458, %v490
    %v507 = vadd.f32 %v459, %v491
    %v508 = vadd.f32 %v460, %v492
    %v509 = vadd.f32 %v461, %v493
    %v510 = vadd.f32 %v462, %v494
    %v511 = vadd.f32 %v463, %v495
    %v512 = vadd.f32 %v464, %v496
    %v513 = vadd.f32 %v465, %v497
    %v514 = vadd.f32 %v466, %v498
    %v515 = vadd.f32 %v467, %v499
    %516 = vmax.xlane.f32.xlu0 %v500
    %v517 = vpop.xlane.xlu0 %516
    %518 = vmax.xlane.f32.xlu0 %v501
    %v519 = vpop.xlane.xlu0 %518
    %520 = vmax.xlane.f32.xlu0 %v502
    %v521 = vpop.xlane.xlu0 %520
    %522 = vmax.xlane.f32.xlu0 %v503
    %v523 = vpop.xlane.xlu0 %522
    %524 = vmax.xlane.f32.xlu0 %v504
    %v525 = vpop.xlane.xlu0 %524
    %526 = vmax.xlane.f32.xlu0 %v505
    %v527 = vpop.xlane.xlu0 %526
    %528 = vmax.xlane.f32.xlu0 %v506
    %v529 = vpop.xlane.xlu0 %528
    %530 = vmax.xlane.f32.xlu0 %v507
    %v531 = vpop.xlane.xlu0 %530
    %532 = vmax.xlane.f32.xlu0 %v508
    %v533 = vpop.xlane.xlu0 %532
    %534 = vmax.xlane.f32.xlu0 %v509
    %v535 = vpop.xlane.xlu0 %534
    %536 = vmax.xlane.f32.xlu0 %v510
    %v537 = vpop.xlane.xlu0 %536
    %538 = vmax.xlane.f32.xlu0 %v511
    %v539 = vpop.xlane.xlu0 %538
    %540 = vmax.xlane.f32.xlu0 %v512
    %v541 = vpop.xlane.xlu0 %540
    %542 = vmax.xlane.f32.xlu0 %v513
    %v543 = vpop.xlane.xlu0 %542
    %544 = vmax.xlane.f32.xlu0 %v514
    %v545 = vpop.xlane.xlu0 %544
    %546 = vmax.xlane.f32.xlu0 %v515
    %v547 = vpop.xlane.xlu0 %546
    %v548 = vsub.f32 %v500, %v517
    %v549 = vsub.f32 %v501, %v519
    %v550 = vsub.f32 %v502, %v521
    %v551 = vsub.f32 %v503, %v523
    %v552 = vsub.f32 %v504, %v525
    %v553 = vsub.f32 %v505, %v527
    %v554 = vsub.f32 %v506, %v529
    %v555 = vsub.f32 %v507, %v531
    %v556 = vsub.f32 %v508, %v533
    %v557 = vsub.f32 %v509, %v535
    %v558 = vsub.f32 %v510, %v537
    %v559 = vsub.f32 %v511, %v539
    %v560 = vsub.f32 %v512, %v541
    %v561 = vsub.f32 %v513, %v543
    %v562 = vsub.f32 %v514, %v545
    %v563 = vsub.f32 %v515, %v547
    %v564 = vmul.f32 %v548, 1.442695
    %v565 = vpow.pop %v564
    %v566 = vmul.f32 %v549, 1.442695
    %v567 = vpow.pop %v566
    %v568 = vmul.f32 %v550, 1.442695
    %v569 = vpow.pop %v568
    %v570 = vmul.f32 %v551, 1.442695
    %v571 = vpow.pop %v570
    %v572 = vmul.f32 %v552, 1.442695
    %v573 = vpow.pop %v572
    %v574 = vmul.f32 %v553, 1.442695
    %v575 = vpow.pop %v574
    %v576 = vmul.f32 %v554, 1.442695
    %v577 = vpow.pop %v576
    %v578 = vmul.f32 %v555, 1.442695
    %v579 = vpow.pop %v578
    %v580 = vmul.f32 %v556, 1.442695
    %v581 = vpow.pop %v580
    %v582 = vmul.f32 %v557, 1.442695
    %v583 = vpow.pop %v582
    %v584 = vmul.f32 %v558, 1.442695
    %v585 = vpow.pop %v584
    %v586 = vmul.f32 %v559, 1.442695
    %v587 = vpow.pop %v586
    %v588 = vmul.f32 %v560, 1.442695
    %v589 = vpow.pop %v588
    %v590 = vmul.f32 %v561, 1.442695
    %v591 = vpow.pop %v590
    %v592 = vmul.f32 %v562, 1.442695
    %v593 = vpow.pop %v592
    %v594 = vmul.f32 %v563, 1.442695
    %v595 = vpow.pop %v594
    %596 = vadd.xlane.f32.xlu0 %v565
    %v597 = vpop.xlane.xlu0 %596
    %598 = vadd.xlane.f32.xlu0 %v567
    %v599 = vpop.xlane.xlu0 %598
    %600 = vadd.xlane.f32.xlu0 %v569
    %v601 = vpop.xlane.xlu0 %600
    %602 = vadd.xlane.f32.xlu0 %v571
    %v603 = vpop.xlane.xlu0 %602
    %604 = vadd.xlane.f32.xlu0 %v573
    %v605 = vpop.xlane.xlu0 %604
    %606 = vadd.xlane.f32.xlu0 %v575
    %v607 = vpop.xlane.xlu0 %606
    %608 = vadd.xlane.f32.xlu0 %v577
    %v609 = vpop.xlane.xlu0 %608
    %610 = vadd.xlane.f32.xlu0 %v579
    %v611 = vpop.xlane.xlu0 %610
    %612 = vadd.xlane.f32.xlu0 %v581
    %v613 = vpop.xlane.xlu0 %612
    %614 = vadd.xlane.f32.xlu0 %v583
    %v615 = vpop.xlane.xlu0 %614
    %616 = vadd.xlane.f32.xlu0 %v585
    %v617 = vpop.xlane.xlu0 %616
    %618 = vadd.xlane.f32.xlu0 %v587
    %v619 = vpop.xlane.xlu0 %618
    %620 = vadd.xlane.f32.xlu0 %v589
    %v621 = vpop.xlane.xlu0 %620
    %622 = vadd.xlane.f32.xlu0 %v591
    %v623 = vpop.xlane.xlu0 %622
    %624 = vadd.xlane.f32.xlu0 %v593
    %v625 = vpop.xlane.xlu0 %624
    %626 = vadd.xlane.f32.xlu0 %v595
    %v627 = vpop.xlane.xlu0 %626
    %v628 = vrcp.pop %v597
    %v629 = vrcp.pop %v599
    %v630 = vrcp.pop %v601
    %v631 = vrcp.pop %v603
    %v632 = vrcp.pop %v605
    %v633 = vrcp.pop %v607
    %v634 = vrcp.pop %v609
    %v635 = vrcp.pop %v611
    %v636 = vrcp.pop %v613
    %v637 = vrcp.pop %v615
    %v638 = vrcp.pop %v617
    %v639 = vrcp.pop %v619
    %v640 = vrcp.pop %v621
    %v641 = vrcp.pop %v623
    %v642 = vrcp.pop %v625
    %v643 = vrcp.pop %v627
    %v644 = vmul.f32 %v565, %v628
    %v645 = vmul.f32 %v567, %v629
    %v646 = vmul.f32 %v569, %v630
    %v647 = vmul.f32 %v571, %v631
    %v648 = vmul.f32 %v573, %v632
    %v649 = vmul.f32 %v575, %v633
    %v650 = vmul.f32 %v577, %v634
    %v651 = vmul.f32 %v579, %v635
    %v652 = vmul.f32 %v581, %v636
    %v653 = vmul.f32 %v583, %v637
    %v654 = vmul.f32 %v585, %v638
    %v655 = vmul.f32 %v587, %v639
    %v656 = vmul.f32 %v589, %v640
    %v657 = vmul.f32 %v591, %v641
    %v658 = vmul.f32 %v593, %v642
    %v659 = vmul.f32 %v595, %v643
    %v660 = vpack.c.bf16 %v645, %v644
    %v661 = vpack.c.bf16 %v647, %v646
    %v662 = vpack.c.bf16 %v649, %v648
    %v663 = vpack.c.bf16 %v651, %v650
    %v664 = vpack.c.bf16 %v653, %v652
    %v665 = vpack.c.bf16 %v655, %v654
    %v666 = vpack.c.bf16 %v657, %v656
    %v667 = vpack.c.bf16 %v659, %v658
    %v668 = vpack.c.bf16 %v231, %v228
    %v669 = vpack.c.bf16 %v239, %v236
    %v670 = vpack.c.bf16 %v247, %v244
    %v671 = vpack.c.bf16 %v255, %v252
    %v672 = vpack.c.bf16 %v263, %v260
    %v673 = vpack.c.bf16 %v271, %v268
    %v674 = vpack.c.bf16 %v279, %v276
    %v675 = vpack.c.bf16 %v287, %v284
    %v676 = vld [vmem:[%s4] sm:$0x1]
    %v678 = vlaneseq
    %v679 = vshrl.u32 %v678, 7
    %v680 = vsub.s32 0, %v679
    %v681 = vrot.slane %v676, %v680
    %683 = vmatprep.subr.bf16.mxu0 0
    %684 = vmatpush1.bf16.msra.mxu0 %v675
    %685 = vmatprep.subr.bf16.mxu0 0
    %686 = vmatpush1.bf16.msra.mxu0 %v674
    %687 = vmatprep.subr.bf16.mxu0 0
    %688 = vmatpush1.bf16.msra.mxu0 %v673
    %689 = vmatprep.subr.bf16.mxu0 0
    %690 = vmatpush1.bf16.msra.mxu0 %v672
    %691 = vmatprep.subr.bf16.mxu0 0
    %692 = vmatpush1.bf16.msra.mxu0 %v671
    %693 = vmatprep.subr.bf16.mxu0 0
    %694 = vmatpush1.bf16.msra.mxu0 %v670
    %695 = vmatprep.subr.bf16.mxu0 0
    %696 = vmatpush1.bf16.msra.mxu0 %v669
    %697 = vmatprep.subr.bf16.mxu0 0
    %698 = vmatpush1.bf16.msra.mxu0 %v668
    %699 = vmatprep.subr.bf16.mxu0 0
    %700 = vmatpush2.bf16.msra.mxu0 0
    %701 = vmatprep.subr.bf16.mxu0 0
    %702 = vmatpush2.bf16.msra.mxu0 0
    %703 = vmatprep.subr.bf16.mxu0 0
    %704 = vmatpush2.bf16.msra.mxu0 0
    %705 = vmatprep.subr.bf16.mxu0 0
    %706 = vmatpush2.bf16.msra.mxu0 0
    %707 = vmatprep.subr.bf16.mxu0 0
    %708 = vmatpush2.bf16.msra.mxu0 0
    %709 = vmatprep.subr.bf16.mxu0 0
    %710 = vmatpush2.bf16.msra.mxu0 0
    %711 = vmatprep.subr.bf16.mxu0 0
    %712 = vmatpush2.bf16.msra.mxu0 0
    %713 = vmatprep.subr.bf16.mxu0 0
    %714 = vmatpush2.bf16.msra.mxu0 0
    %715 = vmatprep.mubr.bf16.mxu0 0
    %716 = vmatmul.mubr.bf16.gmra.mxu0 %v660
    %v717 = vpop.f32.mrf.mxu0
    %v718 = vadd.f32 %v681, %v717
    %v719 = vpop.f32.mrf.mxu0
    %v720 = vpop.f32.mrf.mxu0
    %v721 = vadd.f32 %v681, %v720
    %v722 = vpop.f32.mrf.mxu0
    %723 = vmatprep.mubr.bf16.mxu0 0
    %724 = vmatmul.mubr.bf16.gmra.mxu0 %v661
    %v725 = vpop.f32.mrf.mxu0
    %v726 = vadd.f32 %v681, %v725
    %v727 = vpop.f32.mrf.mxu0
    %v728 = vpop.f32.mrf.mxu0
    %v729 = vadd.f32 %v681, %v728
    %v730 = vpop.f32.mrf.mxu0
    %731 = vmatprep.mubr.bf16.mxu0 0
    %732 = vmatmul.mubr.bf16.gmra.mxu0 %v662
    %v733 = vpop.f32.mrf.mxu0
    %v734 = vadd.f32 %v681, %v733
    %v735 = vpop.f32.mrf.mxu0
    %v736 = vpop.f32.mrf.mxu0
    %v737 = vadd.f32 %v681, %v736
    %v738 = vpop.f32.mrf.mxu0
    %739 = vmatprep.mubr.bf16.mxu0 0
    %740 = vmatmul.mubr.bf16.gmra.mxu0 %v663
    %v741 = vpop.f32.mrf.mxu0
    %v742 = vadd.f32 %v681, %v741
    %v743 = vpop.f32.mrf.mxu0
    %v744 = vpop.f32.mrf.mxu0
    %v745 = vadd.f32 %v681, %v744
    %v746 = vpop.f32.mrf.mxu0
    %747 = vmatprep.mubr.bf16.mxu0 0
    %748 = vmatmul.mubr.bf16.gmra.mxu0 %v664
    %v749 = vpop.f32.mrf.mxu0
    %v750 = vadd.f32 %v681, %v749
    %v751 = vpop.f32.mrf.mxu0
    %v752 = vpop.f32.mrf.mxu0
    %v753 = vadd.f32 %v681, %v752
    %v754 = vpop.f32.mrf.mxu0
    %755 = vmatprep.mubr.bf16.mxu0 0
    %756 = vmatmul.mubr.bf16.gmra.mxu0 %v665
    %v757 = vpop.f32.mrf.mxu0
    %v758 = vadd.f32 %v681, %v757
    %v759 = vpop.f32.mrf.mxu0
    %v760 = vpop.f32.mrf.mxu0
    %v761 = vadd.f32 %v681, %v760
    %v762 = vpop.f32.mrf.mxu0
    %763 = vmatprep.mubr.bf16.mxu0 0
    %764 = vmatmul.mubr.bf16.gmra.mxu0 %v666
    %v765 = vpop.f32.mrf.mxu0
    %v766 = vadd.f32 %v681, %v765
    %v767 = vpop.f32.mrf.mxu0
    %v768 = vpop.f32.mrf.mxu0
    %v769 = vadd.f32 %v681, %v768
    %v770 = vpop.f32.mrf.mxu0
    %771 = vmatprep.mubr.bf16.mxu0 0
    %772 = vmatmul.mubr.bf16.gmra.mxu0 %v667
    %v773 = vpop.f32.mrf.mxu0
    %v774 = vadd.f32 %v681, %v773
    %v775 = vpop.f32.mrf.mxu0
    %v776 = vpop.f32.mrf.mxu0
    %v777 = vadd.f32 %v681, %v776
    %v778 = vpop.f32.mrf.mxu0
    %779 = vdwg.mxu0
    %v780 = vpack.c.bf16 %v721, %v718
    %v781 = vpack.c.bf16 %v729, %v726
    %v782 = vpack.c.bf16 %v737, %v734
    %v783 = vpack.c.bf16 %v745, %v742
    %v784 = vpack.c.bf16 %v753, %v750
    %v785 = vpack.c.bf16 %v761, %v758
    %v786 = vpack.c.bf16 %v769, %v766
    %v787 = vpack.c.bf16 %v777, %v774
    %v796 = vunpack.c.l.b16 %v780
    %v797 = vunpack.c.h.b16 %v780
    %v798 = vunpack.c.l.b16 %v781
    %v799 = vunpack.c.h.b16 %v781
    %v800 = vunpack.c.l.b16 %v782
    %v801 = vunpack.c.h.b16 %v782
    %v802 = vunpack.c.l.b16 %v783
    %v803 = vunpack.c.h.b16 %v783
    %v804 = vunpack.c.l.b16 %v784
    %v805 = vunpack.c.h.b16 %v784
    %v806 = vunpack.c.l.b16 %v785
    %v807 = vunpack.c.h.b16 %v785
    %v808 = vunpack.c.l.b16 %v786
    %v809 = vunpack.c.h.b16 %v786
    %v810 = vunpack.c.l.b16 %v787
    %v811 = vunpack.c.h.b16 %v787
    %v812 = vpack.c.b16 %v796, %v796
    %v813 = vpack.c.b16 %v797, %v797
    %v814 = vpack.c.b16 %v798, %v798
    %v815 = vpack.c.b16 %v799, %v799
    %v816 = vpack.c.b16 %v800, %v800
    %v817 = vpack.c.b16 %v801, %v801
    %v818 = vpack.c.b16 %v802, %v802
    %v819 = vpack.c.b16 %v803, %v803
    %v820 = vpack.c.b16 %v804, %v804
    %v821 = vpack.c.b16 %v805, %v805
    %v822 = vpack.c.b16 %v806, %v806
    %v823 = vpack.c.b16 %v807, %v807
    %v824 = vpack.c.b16 %v808, %v808
    %v825 = vpack.c.b16 %v809, %v809
    %v826 = vpack.c.b16 %v810, %v810
    %v827 = vpack.c.b16 %v811, %v811
    %844 = vst [vmem:[%s6] sm:$0xf] %v812
    %845 = vst [vmem:[%s6 + $0x4] sm:$0xf] %v813
    %846 = vst [vmem:[%s6 + $0x8] sm:$0xf] %v814
    %847 = vst [vmem:[%s6 + $0xc] sm:$0xf] %v815
    %848 = vst [vmem:[%s6 + $0x10] sm:$0xf] %v816
    %849 = vst [vmem:[%s6 + $0x14] sm:$0xf] %v817
    %850 = vst [vmem:[%s6 + $0x18] sm:$0xf] %v818
    %851 = vst [vmem:[%s6 + $0x1c] sm:$0xf] %v819
    %852 = vst [vmem:[%s6 + $0x20] sm:$0xf] %v820
    %853 = vst [vmem:[%s6 + $0x24] sm:$0xf] %v821
    %854 = vst [vmem:[%s6 + $0x28] sm:$0xf] %v822
    %855 = vst [vmem:[%s6 + $0x2c] sm:$0xf] %v823
    %856 = vst [vmem:[%s6 + $0x30] sm:$0xf] %v824
    %857 = vst [vmem:[%s6 + $0x34] sm:$0xf] %v825
    %858 = vst [vmem:[%s6 + $0x38] sm:$0xf] %v826
    %859 = vst [vmem:[%s6 + $0x3c] sm:$0xf] %v827
    // Predicated region
    $region38: #{dggat_forward.2} parent=1 // pred_check
      _
    $region39: #{dggat_forward.2} parent=1 // pred_check_branch
      %861 = sbr.rel (0) target = $region41
    $region40: #{dggat_forward.2} parent=1 // pred_region
      _
    $region41: #{dggat_forward.2} parent=1 // pred_fallthru
      _
    // Predicated region
    $region42: #{dggat_forward.2} parent=1 // pred_check
      _
    $region43: #{dggat_forward.2} parent=1 // pred_check_branch
      %863 = sbr.rel (0) target = $region45
    $region44: #{dggat_forward.2} parent=1 // pred_region
      _
    $region45: #{dggat_forward.2} parent=1 // pred_fallthru
      _
    %864 = vsyncpa [#allocation3], 1
    %865 = vsyncpa [#allocation5], 1

</llo_original>
